<compile_context>
chip_gen: v6e
topology: v6e:2x2x1
jax: 0.10.0
libtpu: 0.0.40
codegen_flags: <defaults>
</compile_context>

<pallas_src>
import functools
import numpy as np
import jax
import jax.numpy as jnp
from jax.experimental import pallas as pl
from jax.experimental.pallas import tpu as pltpu

SILU_SCALE = 1.6765918     # variance-preserving SiLU scale (normalize_func('activation'))
STRUCT_LANES = 128         # structures are padded onto the lane dimension


def _round_up(x, m):
    return ((x + m - 1) // m) * m


def _silu(x):
    """SiLU via a single transcendental: x*sigmoid(x) == 0.5*x*(1 + tanh(0.5*x))."""
    return 0.5 * x * (1.0 + jnp.tanh(0.5 * x))


# ---------------- Pallas kernel ----------------------------------------------
def alchemical_kernel(feat_ref, pw_ref, sidx_ref, w1_ref, w2_ref, w3_ref, w4_ref,
                      out_ref, *, n_pseudo, hidden, matmul_dtype):
    """One grid step processes TM atoms and writes an (8, 128) lane-dense block
    of per-structure partial energies (summed in the wrapper)."""
    feats = feat_ref[...]                          # (TM, n_feat)   matmul_dtype
    pw = pw_ref[...]                               # (TM, n_pseudo) f32
    tm = feats.shape[0]

    # Fused first layer: one (TM, n_feat) @ (n_feat, n_pseudo*hidden) matmul.
    z = jnp.dot(feats, w1_ref[...], preferred_element_type=jnp.float32)  # (TM, P*H) f32

    atomic = jnp.zeros((tm, 1), jnp.float32)
    for a in range(n_pseudo):                      # static unroll over pseudo species
        # scalar-commute: silu(pw_a * (feats @ W1'_a)); all scales pre-folded.
        h = _silu(z[:, a * hidden:(a + 1) * hidden] * pw[:, a:a + 1])
        h = _silu(jnp.dot(h.astype(matmul_dtype), w2_ref[a],
                          preferred_element_type=jnp.float32))
        h = _silu(jnp.dot(h.astype(matmul_dtype), w3_ref[a],
                          preferred_element_type=jnp.float32))
        # last layer (hidden -> 1): VPU multiply + lane reduce (XLU), w4 on lanes.
        atomic = atomic + jnp.sum(h * w4_ref[a:a + 1, :], axis=-1, keepdims=True)

    # Build the per-structure mask in-kernel (no one-hot DMA): lane == struct_idx.
    sidx = sidx_ref[...]                                           # (TM, 1) int32
    lanes = jax.lax.broadcasted_iota(jnp.int32, (tm, STRUCT_LANES), 1)
    contrib = jnp.where(lanes == sidx, atomic, 0.0)                # (TM, 128) f32

    # per-structure partial sums for this block: pairwise tree over sublane groups.
    chunks = [contrib[j * 8:(j + 1) * 8, :] for j in range(tm // 8)]
    while len(chunks) > 1:
        nxt = []
        for i in range(0, len(chunks) - 1, 2):
            nxt.append(chunks[i] + chunks[i + 1])
        if len(chunks) % 2:
            nxt.append(chunks[-1])
        chunks = nxt
    out_ref[...] = chunks[0]                                       # (8, 128)


# ---------------- wrapper -----------------------------------------------------
def preprocess_params(comb_w, w1, w2, w3, w4, avg_n_atoms, matmul_dtype):
    """Fold every scalar normalization constant into the weights (one-time cost)
    and lay the first layer out as a single (n_feat, n_pseudo*hidden) matrix."""
    del comb_w  # applied in the wrapper (pw is computed outside the kernel)
    n_pseudo, n_feat, hidden = w1.shape
    inv_feat = 1.0 / np.sqrt(n_feat)
    act_over_hid = SILU_SCALE / np.sqrt(hidden)
    w1c = (jnp.transpose(w1, (1, 0, 2)).reshape(n_feat, n_pseudo * hidden)
           * inv_feat).astype(matmul_dtype)                          # (n_feat, P*H)
    w2s = (w2 * act_over_hid).astype(matmul_dtype)                   # (P, H, H)
    w3s = (w3 * act_over_hid).astype(matmul_dtype)                   # (P, H, H)
    w4s = (w4[..., 0] * (act_over_hid / (np.sqrt(n_pseudo) * avg_n_atoms))
           ).astype(jnp.float32)                                     # (P, H)
    return w1c, w2s, w3s, w4s


def alchemical_energies(features, species_onehot, struct_idx, comb_w,
                        w1, w2, w3, w4, n_structures, avg_n_atoms,
                        *, matmul_dtype=jnp.bfloat16, tm=256):
    n_atoms, n_feat = features.shape
    n_pseudo, hidden = w2.shape[0], w2.shape[1]
    assert n_structures <= STRUCT_LANES

    # combination matrix (Linear n_species -> n_pseudo, no bias) in the wrapper.
    pw = species_onehot.astype(jnp.float32) @ comb_w.astype(jnp.float32).T

    w1c, w2s, w3s, w4s = preprocess_params(comb_w, w1, w2, w3, w4,
                                           avg_n_atoms, matmul_dtype)

    # Tile size: multiple of 16 rows (native bf16 tile), clamped to the input
    # size so tiny problems stay single-block. Padded rows are all-zero features
    # with an out-of-range structure index, so they contribute exactly nothing.
    tm = max(16, min(tm, _round_up(n_atoms, 16)))
    tm = _round_up(tm, 16)
    n_pad = _round_up(n_atoms, tm)
    n_blocks = n_pad // tm

    feats_p = jnp.zeros((n_pad, n_feat), matmul_dtype).at[:n_atoms].set(
        features.astype(matmul_dtype))
    pw_p = jnp.zeros((n_pad, n_pseudo), jnp.float32).at[:n_atoms].set(pw)
    sidx_p = jnp.full((n_pad, 1), STRUCT_LANES, jnp.int32).at[:n_atoms, 0].set(
        struct_idx.astype(jnp.int32))

    full = lambda shape: pl.BlockSpec(shape, lambda i: (0,) * len(shape))

    kernel = functools.partial(alchemical_kernel, n_pseudo=n_pseudo,
                               hidden=hidden, matmul_dtype=matmul_dtype)

    partials = pl.pallas_call(
        kernel,
        out_shape=jax.ShapeDtypeStruct((n_blocks * 8, STRUCT_LANES), jnp.float32),
        grid_spec=pltpu.PrefetchScalarGridSpec(
            num_scalar_prefetch=0,
            grid=(n_blocks,),
            in_specs=[
                pl.BlockSpec((tm, n_feat), lambda i: (i, 0)),
                pl.BlockSpec((tm, n_pseudo), lambda i: (i, 0)),
                pl.BlockSpec((tm, 1), lambda i: (i, 0)),        # struct idx, int32
                full((n_feat, n_pseudo * hidden)),              # grid-invariant weights
                full((n_pseudo, hidden, hidden)),
                full((n_pseudo, hidden, hidden)),
                full((n_pseudo, hidden)),
            ],
            out_specs=pl.BlockSpec((8, STRUCT_LANES), lambda i: (i, 0)),
        ),
        compiler_params=pltpu.CompilerParams(
            dimension_semantics=("parallel",)),   # atom axis is embarrassingly parallel
    )(feats_p, pw_p, sidx_p, w1c, w2s, w3s, w4s)

    # tiny cross-block / cross-sublane reduction in XLA
    return partials.sum(axis=0)[:n_structures]


# ---------------- references (for correctness) --------------------------------
def reference_module(features, species_onehot, struct_idx, comb_w, w1, w2, w3, w4,
                     n_structures, avg_n_atoms):
    """Faithful f32 re-implementation of Model._apply_layer + /avg_n_atoms."""
    n_pseudo, n_feat, hidden = w1.shape
    pw = species_onehot @ comb_w.T
    atomic = jnp.zeros((features.shape[0],), jnp.float32)
    for a in range(n_pseudo):
        x = features * pw[:, a:a + 1]
        h = jax.nn.silu(x @ w1[a] / np.sqrt(n_feat)) * SILU_SCALE
        h = jax.nn.silu(h @ w2[a] / np.sqrt(hidden)) * SILU_SCALE
        h = jax.nn.silu(h @ w3[a] / np.sqrt(hidden)) * SILU_SCALE
        atomic = atomic + (h @ w4[a] / np.sqrt(hidden))[:, 0]
    atomic = atomic / np.sqrt(n_pseudo)
    energies = jax.ops.segment_sum(atomic, struct_idx, num_segments=n_structures)
    return energies / avg_n_atoms


def reference_preprocessed(feats_cast, pw, struct_idx, w1c, w2s, w3s, w4s,
                           n_structures, matmul_dtype):
    """Same math as the Pallas kernel, in plain jnp (like-for-like bf16 check)."""
    n_pseudo, hidden = w4s.shape
    z = jnp.dot(feats_cast, w1c, preferred_element_type=jnp.float32)
    atomic = jnp.zeros((feats_cast.shape[0], 1), jnp.float32)
    for a in range(n_pseudo):
        h = _silu(z[:, a * hidden:(a + 1) * hidden] * pw[:, a:a + 1])
        h = _silu(jnp.dot(h.astype(matmul_dtype), w2s[a],
                          preferred_element_type=jnp.float32))
        h = _silu(jnp.dot(h.astype(matmul_dtype), w3s[a],
                          preferred_element_type=jnp.float32))
        atomic = atomic + jnp.sum(h * w4s[a][None, :], axis=-1, keepdims=True)
    return jax.ops.segment_sum(atomic[:, 0], struct_idx, num_segments=n_structures)


# ---------------- driver ------------------------------------------------------
if __name__ == "__main__":
    key = jax.random.PRNGKey(0)
    keys = jax.random.split(key, 10)

    N_PSEUDO, N_SPECIES, N_FEAT, HIDDEN = 4, 4, 128, 256

    comb_w = jax.random.normal(keys[0], (N_PSEUDO, N_SPECIES), jnp.float32)
    w1 = jax.random.normal(keys[1], (N_PSEUDO, N_FEAT, HIDDEN), jnp.float32)
    w2 = jax.random.normal(keys[2], (N_PSEUDO, HIDDEN, HIDDEN), jnp.float32)
    w3 = jax.random.normal(keys[3], (N_PSEUDO, HIDDEN, HIDDEN), jnp.float32)
    w4 = jax.random.normal(keys[4], (N_PSEUDO, HIDDEN, 1), jnp.float32)

    # ---- test 1: module-sized toy problem, f32 matmuls, faithful reference ----
    n_struct_a, atoms_per_struct = 2, 8
    n_atoms_a = n_struct_a * atoms_per_struct
    avg_a = float(atoms_per_struct)
    feats_a = jax.random.normal(keys[5], (n_atoms_a, N_FEAT), jnp.float32)
    species_a = jax.nn.one_hot(
        jax.random.randint(keys[6], (n_atoms_a,), 0, N_SPECIES), N_SPECIES,
        dtype=jnp.float32)
    struct_a = jnp.repeat(jnp.arange(n_struct_a), atoms_per_struct)

    e_kernel_a = jax.block_until_ready(alchemical_energies(
        feats_a, species_a, struct_a, comb_w, w1, w2, w3, w4,
        n_struct_a, avg_a, matmul_dtype=jnp.float32))
    e_ref_a = reference_module(feats_a, species_a, struct_a, comb_w, w1, w2, w3, w4,
                               n_struct_a, avg_a)
    np.testing.assert_allclose(np.asarray(e_kernel_a), np.asarray(e_ref_a),
                               rtol=1e-2, atol=1e-2)

    # ---- test 2: larger atom count, bf16 matmuls, multi-block grid + padding ---
    n_struct_b, n_atoms_b = 3, 500          # 500 -> padded to 512, 2 grid steps @ TM=256
    avg_b = n_atoms_b / n_struct_b
    feats_b = jax.random.normal(keys[7], (n_atoms_b, N_FEAT), jnp.float32)
    species_b = jax.nn.one_hot(
        jax.random.randint(keys[8], (n_atoms_b,), 0, N_SPECIES), N_SPECIES,
        dtype=jnp.float32)
    struct_b = jnp.arange(n_atoms_b) % n_struct_b

    e_kernel_b = jax.block_until_ready(alchemical_energies(
        feats_b, species_b, struct_b, comb_w, w1, w2, w3, w4,
        n_struct_b, avg_b, matmul_dtype=jnp.bfloat16, tm=256))

    # like-for-like bf16 reference (identical folded weights / casts): tight check
    pw_b = species_b @ comb_w.T
    w1c, w2s, w3s, w4s = preprocess_params(comb_w, w1, w2, w3, w4, avg_b, jnp.bfloat16)
    e_ref_b_pre = reference_preprocessed(feats_b.astype(jnp.bfloat16), pw_b, struct_b,
                                         w1c, w2s, w3s, w4s, n_struct_b, jnp.bfloat16)
    np.testing.assert_allclose(np.asarray(e_kernel_b), np.asarray(e_ref_b_pre),
                               rtol=2e-3, atol=2e-3)

    # faithful f32 module reference: loose check (bf16 quantization of operands)
    e_ref_b = reference_module(feats_b, species_b, struct_b, comb_w, w1, w2, w3, w4,
                               n_struct_b, avg_b)
    np.testing.assert_allclose(np.asarray(e_kernel_b), np.asarray(e_ref_b),
                               rtol=1e-1, atol=5e-2)

    print("KERNEL_OK")
</pallas_src>

<mosaic_0001>
module attributes {stable_mosaic.version = 11 : i64} {
  func.func @alchemical_kernel(%arg0: i32, %arg1: memref<16x128xf32, #tpu.memory_space<vmem>>, %arg2: memref<16x4xf32, #tpu.memory_space<vmem>>, %arg3: memref<16x1xi32, #tpu.memory_space<vmem>>, %arg4: memref<128x1024xf32, #tpu.memory_space<vmem>>, %arg5: memref<4x256x256xf32, #tpu.memory_space<vmem>>, %arg6: memref<4x256x256xf32, #tpu.memory_space<vmem>>, %arg7: memref<4x256xf32, #tpu.memory_space<vmem>>, %arg8: memref<8x128xf32, #tpu.memory_space<vmem>>) attributes {dimension_semantics = [#tpu.dimension_semantics<parallel>], iteration_bounds = array<i64: 1>, scalar_prefetch = 0 : i64, scratch_operands = 0 : i64, tpu.core_type = #tpu.core_type<tc>, window_params = [{transform_indices = @transform_0, window_bounds = array<i64: 16, 128>}, {transform_indices = @transform_1, window_bounds = array<i64: 16, 4>}, {transform_indices = @transform_2, window_bounds = array<i64: 16, 1>}, {pipeline_mode = #tpu.pipeline_mode<synchronous>, transform_indices = @transform_3, window_bounds = array<i64: 128, 1024>}, {pipeline_mode = #tpu.pipeline_mode<synchronous>, transform_indices = @transform_4, window_bounds = array<i64: 4, 256, 256>}, {pipeline_mode = #tpu.pipeline_mode<synchronous>, transform_indices = @transform_5, window_bounds = array<i64: 4, 256, 256>}, {pipeline_mode = #tpu.pipeline_mode<synchronous>, transform_indices = @transform_6, window_bounds = array<i64: 4, 256>}, {transform_indices = @transform_7, window_bounds = array<i64: 8, 128>}]} {
    %c0 = arith.constant 0 : index
    %c0_0 = arith.constant 0 : index
    %0 = vector.load %arg1[%c0, %c0_0] : memref<16x128xf32, #tpu.memory_space<vmem>>, vector<16x128xf32>
    %c0_1 = arith.constant 0 : index
    %c0_2 = arith.constant 0 : index
    %1 = vector.load %arg2[%c0_1, %c0_2] : memref<16x4xf32, #tpu.memory_space<vmem>>, vector<16x4xf32>
    %c0_3 = arith.constant 0 : index
    %c0_4 = arith.constant 0 : index
    %2 = vector.load %arg4[%c0_3, %c0_4] : memref<128x1024xf32, #tpu.memory_space<vmem>>, vector<128x1024xf32>
    %cst = arith.constant dense<0.000000e+00> : vector<16x1024xf32>
    %3 = tpu.matmul %0, %2, %cst {dimension_numbers = #tpu.dot_dimension_numbers<[1], [0], [0], [1], [0, 0, 1, 1], [], []>} : vector<16x128xf32>, vector<128x1024xf32>, vector<16x1024xf32> -> vector<16x1024xf32>
    %cst_5 = arith.constant 0.000000e+00 : f32
    %4 = vector.broadcast %cst_5 : f32 to vector<16x1xf32>
    %5 = vector.extract_strided_slice %3 {offsets = [0, 0], sizes = [16, 256], strides = [1, 1]} : vector<16x1024xf32> to vector<16x256xf32>
    %6 = vector.extract_strided_slice %1 {offsets = [0, 0], sizes = [16, 1], strides = [1, 1]} : vector<16x4xf32> to vector<16x1xf32>
    %7 = vector.broadcast %6 : vector<16x1xf32> to vector<16x256xf32>
    %8 = arith.mulf %5, %7 : vector<16x256xf32>
    %cst_6 = arith.constant 5.000000e-01 : f32
    %9 = vector.broadcast %cst_6 : f32 to vector<16x256xf32>
    %10 = arith.mulf %9, %8 : vector<16x256xf32>
    %cst_7 = arith.constant 5.000000e-01 : f32
    %11 = vector.broadcast %cst_7 : f32 to vector<16x256xf32>
    %12 = arith.mulf %11, %8 : vector<16x256xf32>
    %13 = math.tanh %12 : vector<16x256xf32>
    %cst_8 = arith.constant 1.000000e+00 : f32
    %14 = vector.broadcast %cst_8 : f32 to vector<16x256xf32>
    %15 = arith.addf %14, %13 : vector<16x256xf32>
    %16 = arith.mulf %10, %15 : vector<16x256xf32>
    %c0_9 = arith.constant 0 : index
    %c0_10 = arith.constant 0 : index
    %c0_11 = arith.constant 0 : index
    %17 = vector.load %arg5[%c0_9, %c0_10, %c0_11] : memref<4x256x256xf32, #tpu.memory_space<vmem>>, vector<1x256x256xf32>
    %18 = vector.shape_cast %17 : vector<1x256x256xf32> to vector<256x256xf32>
    %cst_12 = arith.constant dense<0.000000e+00> : vector<16x256xf32>
    %19 = tpu.matmul %16, %18, %cst_12 {dimension_numbers = #tpu.dot_dimension_numbers<[1], [0], [0], [1], [0, 0, 1, 1], [], []>} : vector<16x256xf32>, vector<256x256xf32>, vector<16x256xf32> -> vector<16x256xf32>
    %cst_13 = arith.constant 5.000000e-01 : f32
    %20 = vector.broadcast %cst_13 : f32 to vector<16x256xf32>
    %21 = arith.mulf %20, %19 : vector<16x256xf32>
    %cst_14 = arith.constant 5.000000e-01 : f32
    %22 = vector.broadcast %cst_14 : f32 to vector<16x256xf32>
    %23 = arith.mulf %22, %19 : vector<16x256xf32>
    %24 = math.tanh %23 : vector<16x256xf32>
    %cst_15 = arith.constant 1.000000e+00 : f32
    %25 = vector.broadcast %cst_15 : f32 to vector<16x256xf32>
    %26 = arith.addf %25, %24 : vector<16x256xf32>
    %27 = arith.mulf %21, %26 : vector<16x256xf32>
    %c0_16 = arith.constant 0 : index
    %c0_17 = arith.constant 0 : index
    %c0_18 = arith.constant 0 : index
    %28 = vector.load %arg6[%c0_16, %c0_17, %c0_18] : memref<4x256x256xf32, #tpu.memory_space<vmem>>, vector<1x256x256xf32>
    %29 = vector.shape_cast %28 : vector<1x256x256xf32> to vector<256x256xf32>
    %cst_19 = arith.constant dense<0.000000e+00> : vector<16x256xf32>
    %30 = tpu.matmul %27, %29, %cst_19 {dimension_numbers = #tpu.dot_dimension_numbers<[1], [0], [0], [1], [0, 0, 1, 1], [], []>} : vector<16x256xf32>, vector<256x256xf32>, vector<16x256xf32> -> vector<16x256xf32>
    %cst_20 = arith.constant 5.000000e-01 : f32
    %31 = vector.broadcast %cst_20 : f32 to vector<16x256xf32>
    %32 = arith.mulf %31, %30 : vector<16x256xf32>
    %cst_21 = arith.constant 5.000000e-01 : f32
    %33 = vector.broadcast %cst_21 : f32 to vector<16x256xf32>
    %34 = arith.mulf %33, %30 : vector<16x256xf32>
    %35 = math.tanh %34 : vector<16x256xf32>
    %cst_22 = arith.constant 1.000000e+00 : f32
    %36 = vector.broadcast %cst_22 : f32 to vector<16x256xf32>
    %37 = arith.addf %36, %35 : vector<16x256xf32>
    %38 = arith.mulf %32, %37 : vector<16x256xf32>
    %c0_23 = arith.constant 0 : index
    %c0_24 = arith.constant 0 : index
    %39 = vector.load %arg7[%c0_23, %c0_24] : memref<4x256xf32, #tpu.memory_space<vmem>>, vector<1x256xf32>
    %40 = vector.broadcast %39 : vector<1x256xf32> to vector<16x256xf32>
    %41 = arith.mulf %38, %40 : vector<16x256xf32>
    %cst_25 = arith.constant dense<0.000000e+00> : vector<16xf32>
    %42 = vector.multi_reduction <add>, %41, %cst_25 [1] : vector<16x256xf32> to vector<16xf32>
    %43 = vector.shape_cast %42 : vector<16xf32> to vector<16x1xf32>
    %44 = arith.addf %4, %43 : vector<16x1xf32>
    %45 = vector.extract_strided_slice %3 {offsets = [0, 256], sizes = [16, 256], strides = [1, 1]} : vector<16x1024xf32> to vector<16x256xf32>
    %46 = vector.extract_strided_slice %1 {offsets = [0, 1], sizes = [16, 1], strides = [1, 1]} : vector<16x4xf32> to vector<16x1xf32>
    %47 = vector.broadcast %46 : vector<16x1xf32> to vector<16x256xf32>
    %48 = arith.mulf %45, %47 : vector<16x256xf32>
    %cst_26 = arith.constant 5.000000e-01 : f32
    %49 = vector.broadcast %cst_26 : f32 to vector<16x256xf32>
    %50 = arith.mulf %49, %48 : vector<16x256xf32>
    %cst_27 = arith.constant 5.000000e-01 : f32
    %51 = vector.broadcast %cst_27 : f32 to vector<16x256xf32>
    %52 = arith.mulf %51, %48 : vector<16x256xf32>
    %53 = math.tanh %52 : vector<16x256xf32>
    %cst_28 = arith.constant 1.000000e+00 : f32
    %54 = vector.broadcast %cst_28 : f32 to vector<16x256xf32>
    %55 = arith.addf %54, %53 : vector<16x256xf32>
    %56 = arith.mulf %50, %55 : vector<16x256xf32>
    %c1 = arith.constant 1 : index
    %c0_29 = arith.constant 0 : index
    %c0_30 = arith.constant 0 : index
    %57 = vector.load %arg5[%c1, %c0_29, %c0_30] : memref<4x256x256xf32, #tpu.memory_space<vmem>>, vector<1x256x256xf32>
    %58 = vector.shape_cast %57 : vector<1x256x256xf32> to vector<256x256xf32>
    %cst_31 = arith.constant dense<0.000000e+00> : vector<16x256xf32>
    %59 = tpu.matmul %56, %58, %cst_31 {dimension_numbers = #tpu.dot_dimension_numbers<[1], [0], [0], [1], [0, 0, 1, 1], [], []>} : vector<16x256xf32>, vector<256x256xf32>, vector<16x256xf32> -> vector<16x256xf32>
    %cst_32 = arith.constant 5.000000e-01 : f32
    %60 = vector.broadcast %cst_32 : f32 to vector<16x256xf32>
    %61 = arith.mulf %60, %59 : vector<16x256xf32>
    %cst_33 = arith.constant 5.000000e-01 : f32
    %62 = vector.broadcast %cst_33 : f32 to vector<16x256xf32>
    %63 = arith.mulf %62, %59 : vector<16x256xf32>
    %64 = math.tanh %63 : vector<16x256xf32>
    %cst_34 = arith.constant 1.000000e+00 : f32
    %65 = vector.broadcast %cst_34 : f32 to vector<16x256xf32>
    %66 = arith.addf %65, %64 : vector<16x256xf32>
    %67 = arith.mulf %61, %66 : vector<16x256xf32>
    %c1_35 = arith.constant 1 : index
    %c0_36 = arith.constant 0 : index
    %c0_37 = arith.constant 0 : index
    %68 = vector.load %arg6[%c1_35, %c0_36, %c0_37] : memref<4x256x256xf32, #tpu.memory_space<vmem>>, vector<1x256x256xf32>
    %69 = vector.shape_cast %68 : vector<1x256x256xf32> to vector<256x256xf32>
    %cst_38 = arith.constant dense<0.000000e+00> : vector<16x256xf32>
    %70 = tpu.matmul %67, %69, %cst_38 {dimension_numbers = #tpu.dot_dimension_numbers<[1], [0], [0], [1], [0, 0, 1, 1], [], []>} : vector<16x256xf32>, vector<256x256xf32>, vector<16x256xf32> -> vector<16x256xf32>
    %cst_39 = arith.constant 5.000000e-01 : f32
    %71 = vector.broadcast %cst_39 : f32 to vector<16x256xf32>
    %72 = arith.mulf %71, %70 : vector<16x256xf32>
    %cst_40 = arith.constant 5.000000e-01 : f32
    %73 = vector.broadcast %cst_40 : f32 to vector<16x256xf32>
    %74 = arith.mulf %73, %70 : vector<16x256xf32>
    %75 = math.tanh %74 : vector<16x256xf32>
    %cst_41 = arith.constant 1.000000e+00 : f32
    %76 = vector.broadcast %cst_41 : f32 to vector<16x256xf32>
    %77 = arith.addf %76, %75 : vector<16x256xf32>
    %78 = arith.mulf %72, %77 : vector<16x256xf32>
    %c1_42 = arith.constant 1 : index
    %c0_43 = arith.constant 0 : index
    %79 = vector.load %arg7[%c1_42, %c0_43] : memref<4x256xf32, #tpu.memory_space<vmem>>, vector<1x256xf32>
    %80 = vector.broadcast %79 : vector<1x256xf32> to vector<16x256xf32>
    %81 = arith.mulf %78, %80 : vector<16x256xf32>
    %cst_44 = arith.constant dense<0.000000e+00> : vector<16xf32>
    %82 = vector.multi_reduction <add>, %81, %cst_44 [1] : vector<16x256xf32> to vector<16xf32>
    %83 = vector.shape_cast %82 : vector<16xf32> to vector<16x1xf32>
    %84 = arith.addf %44, %83 : vector<16x1xf32>
    %85 = vector.extract_strided_slice %3 {offsets = [0, 512], sizes = [16, 256], strides = [1, 1]} : vector<16x1024xf32> to vector<16x256xf32>
    %86 = vector.extract_strided_slice %1 {offsets = [0, 2], sizes = [16, 1], strides = [1, 1]} : vector<16x4xf32> to vector<16x1xf32>
    %87 = vector.broadcast %86 : vector<16x1xf32> to vector<16x256xf32>
    %88 = arith.mulf %85, %87 : vector<16x256xf32>
    %cst_45 = arith.constant 5.000000e-01 : f32
    %89 = vector.broadcast %cst_45 : f32 to vector<16x256xf32>
    %90 = arith.mulf %89, %88 : vector<16x256xf32>
    %cst_46 = arith.constant 5.000000e-01 : f32
    %91 = vector.broadcast %cst_46 : f32 to vector<16x256xf32>
    %92 = arith.mulf %91, %88 : vector<16x256xf32>
    %93 = math.tanh %92 : vector<16x256xf32>
    %cst_47 = arith.constant 1.000000e+00 : f32
    %94 = vector.broadcast %cst_47 : f32 to vector<16x256xf32>
    %95 = arith.addf %94, %93 : vector<16x256xf32>
    %96 = arith.mulf %90, %95 : vector<16x256xf32>
    %c2 = arith.constant 2 : index
    %c0_48 = arith.constant 0 : index
    %c0_49 = arith.constant 0 : index
    %97 = vector.load %arg5[%c2, %c0_48, %c0_49] : memref<4x256x256xf32, #tpu.memory_space<vmem>>, vector<1x256x256xf32>
    %98 = vector.shape_cast %97 : vector<1x256x256xf32> to vector<256x256xf32>
    %cst_50 = arith.constant dense<0.000000e+00> : vector<16x256xf32>
    %99 = tpu.matmul %96, %98, %cst_50 {dimension_numbers = #tpu.dot_dimension_numbers<[1], [0], [0], [1], [0, 0, 1, 1], [], []>} : vector<16x256xf32>, vector<256x256xf32>, vector<16x256xf32> -> vector<16x256xf32>
    %cst_51 = arith.constant 5.000000e-01 : f32
    %100 = vector.broadcast %cst_51 : f32 to vector<16x256xf32>
    %101 = arith.mulf %100, %99 : vector<16x256xf32>
    %cst_52 = arith.constant 5.000000e-01 : f32
    %102 = vector.broadcast %cst_52 : f32 to vector<16x256xf32>
    %103 = arith.mulf %102, %99 : vector<16x256xf32>
    %104 = math.tanh %103 : vector<16x256xf32>
    %cst_53 = arith.constant 1.000000e+00 : f32
    %105 = vector.broadcast %cst_53 : f32 to vector<16x256xf32>
    %106 = arith.addf %105, %104 : vector<16x256xf32>
    %107 = arith.mulf %101, %106 : vector<16x256xf32>
    %c2_54 = arith.constant 2 : index
    %c0_55 = arith.constant 0 : index
    %c0_56 = arith.constant 0 : index
    %108 = vector.load %arg6[%c2_54, %c0_55, %c0_56] : memref<4x256x256xf32, #tpu.memory_space<vmem>>, vector<1x256x256xf32>
    %109 = vector.shape_cast %108 : vector<1x256x256xf32> to vector<256x256xf32>
    %cst_57 = arith.constant dense<0.000000e+00> : vector<16x256xf32>
    %110 = tpu.matmul %107, %109, %cst_57 {dimension_numbers = #tpu.dot_dimension_numbers<[1], [0], [0], [1], [0, 0, 1, 1], [], []>} : vector<16x256xf32>, vector<256x256xf32>, vector<16x256xf32> -> vector<16x256xf32>
    %cst_58 = arith.constant 5.000000e-01 : f32
    %111 = vector.broadcast %cst_58 : f32 to vector<16x256xf32>
    %112 = arith.mulf %111, %110 : vector<16x256xf32>
    %cst_59 = arith.constant 5.000000e-01 : f32
    %113 = vector.broadcast %cst_59 : f32 to vector<16x256xf32>
    %114 = arith.mulf %113, %110 : vector<16x256xf32>
    %115 = math.tanh %114 : vector<16x256xf32>
    %cst_60 = arith.constant 1.000000e+00 : f32
    %116 = vector.broadcast %cst_60 : f32 to vector<16x256xf32>
    %117 = arith.addf %116, %115 : vector<16x256xf32>
    %118 = arith.mulf %112, %117 : vector<16x256xf32>
    %c2_61 = arith.constant 2 : index
    %c0_62 = arith.constant 0 : index
    %119 = vector.load %arg7[%c2_61, %c0_62] : memref<4x256xf32, #tpu.memory_space<vmem>>, vector<1x256xf32>
    %120 = vector.broadcast %119 : vector<1x256xf32> to vector<16x256xf32>
    %121 = arith.mulf %118, %120 : vector<16x256xf32>
    %cst_63 = arith.constant dense<0.000000e+00> : vector<16xf32>
    %122 = vector.multi_reduction <add>, %121, %cst_63 [1] : vector<16x256xf32> to vector<16xf32>
    %123 = vector.shape_cast %122 : vector<16xf32> to vector<16x1xf32>
    %124 = arith.addf %84, %123 : vector<16x1xf32>
    %125 = vector.extract_strided_slice %3 {offsets = [0, 768], sizes = [16, 256], strides = [1, 1]} : vector<16x1024xf32> to vector<16x256xf32>
    %126 = vector.extract_strided_slice %1 {offsets = [0, 3], sizes = [16, 1], strides = [1, 1]} : vector<16x4xf32> to vector<16x1xf32>
    %127 = vector.broadcast %126 : vector<16x1xf32> to vector<16x256xf32>
    %128 = arith.mulf %125, %127 : vector<16x256xf32>
    %cst_64 = arith.constant 5.000000e-01 : f32
    %129 = vector.broadcast %cst_64 : f32 to vector<16x256xf32>
    %130 = arith.mulf %129, %128 : vector<16x256xf32>
    %cst_65 = arith.constant 5.000000e-01 : f32
    %131 = vector.broadcast %cst_65 : f32 to vector<16x256xf32>
    %132 = arith.mulf %131, %128 : vector<16x256xf32>
    %133 = math.tanh %132 : vector<16x256xf32>
    %cst_66 = arith.constant 1.000000e+00 : f32
    %134 = vector.broadcast %cst_66 : f32 to vector<16x256xf32>
    %135 = arith.addf %134, %133 : vector<16x256xf32>
    %136 = arith.mulf %130, %135 : vector<16x256xf32>
    %c3 = arith.constant 3 : index
    %c0_67 = arith.constant 0 : index
    %c0_68 = arith.constant 0 : index
    %137 = vector.load %arg5[%c3, %c0_67, %c0_68] : memref<4x256x256xf32, #tpu.memory_space<vmem>>, vector<1x256x256xf32>
    %138 = vector.shape_cast %137 : vector<1x256x256xf32> to vector<256x256xf32>
    %cst_69 = arith.constant dense<0.000000e+00> : vector<16x256xf32>
    %139 = tpu.matmul %136, %138, %cst_69 {dimension_numbers = #tpu.dot_dimension_numbers<[1], [0], [0], [1], [0, 0, 1, 1], [], []>} : vector<16x256xf32>, vector<256x256xf32>, vector<16x256xf32> -> vector<16x256xf32>
    %cst_70 = arith.constant 5.000000e-01 : f32
    %140 = vector.broadcast %cst_70 : f32 to vector<16x256xf32>
    %141 = arith.mulf %140, %139 : vector<16x256xf32>
    %cst_71 = arith.constant 5.000000e-01 : f32
    %142 = vector.broadcast %cst_71 : f32 to vector<16x256xf32>
    %143 = arith.mulf %142, %139 : vector<16x256xf32>
    %144 = math.tanh %143 : vector<16x256xf32>
    %cst_72 = arith.constant 1.000000e+00 : f32
    %145 = vector.broadcast %cst_72 : f32 to vector<16x256xf32>
    %146 = arith.addf %145, %144 : vector<16x256xf32>
    %147 = arith.mulf %141, %146 : vector<16x256xf32>
    %c3_73 = arith.constant 3 : index
    %c0_74 = arith.constant 0 : index
    %c0_75 = arith.constant 0 : index
    %148 = vector.load %arg6[%c3_73, %c0_74, %c0_75] : memref<4x256x256xf32, #tpu.memory_space<vmem>>, vector<1x256x256xf32>
    %149 = vector.shape_cast %148 : vector<1x256x256xf32> to vector<256x256xf32>
    %cst_76 = arith.constant dense<0.000000e+00> : vector<16x256xf32>
    %150 = tpu.matmul %147, %149, %cst_76 {dimension_numbers = #tpu.dot_dimension_numbers<[1], [0], [0], [1], [0, 0, 1, 1], [], []>} : vector<16x256xf32>, vector<256x256xf32>, vector<16x256xf32> -> vector<16x256xf32>
    %cst_77 = arith.constant 5.000000e-01 : f32
    %151 = vector.broadcast %cst_77 : f32 to vector<16x256xf32>
    %152 = arith.mulf %151, %150 : vector<16x256xf32>
    %cst_78 = arith.constant 5.000000e-01 : f32
    %153 = vector.broadcast %cst_78 : f32 to vector<16x256xf32>
    %154 = arith.mulf %153, %150 : vector<16x256xf32>
    %155 = math.tanh %154 : vector<16x256xf32>
    %cst_79 = arith.constant 1.000000e+00 : f32
    %156 = vector.broadcast %cst_79 : f32 to vector<16x256xf32>
    %157 = arith.addf %156, %155 : vector<16x256xf32>
    %158 = arith.mulf %152, %157 : vector<16x256xf32>
    %c3_80 = arith.constant 3 : index
    %c0_81 = arith.constant 0 : index
    %159 = vector.load %arg7[%c3_80, %c0_81] : memref<4x256xf32, #tpu.memory_space<vmem>>, vector<1x256xf32>
    %160 = vector.broadcast %159 : vector<1x256xf32> to vector<16x256xf32>
    %161 = arith.mulf %158, %160 : vector<16x256xf32>
    %cst_82 = arith.constant dense<0.000000e+00> : vector<16xf32>
    %162 = vector.multi_reduction <add>, %161, %cst_82 [1] : vector<16x256xf32> to vector<16xf32>
    %163 = vector.shape_cast %162 : vector<16xf32> to vector<16x1xf32>
    %164 = arith.addf %124, %163 : vector<16x1xf32>
    %c0_83 = arith.constant 0 : index
    %c0_84 = arith.constant 0 : index
    %165 = vector.load %arg3[%c0_83, %c0_84] : memref<16x1xi32, #tpu.memory_space<vmem>>, vector<16x1xi32>
    %166 = tpu.iota {dimensions = array<i32: 1>} : vector<16x128xi32>
    %167 = vector.broadcast %165 : vector<16x1xi32> to vector<16x128xi32>
    %168 = arith.cmpi eq, %166, %167 : vector<16x128xi32>
    %cst_85 = arith.constant 0.000000e+00 : f32
    %169 = vector.shape_cast %164 : vector<16x1xf32> to vector<16x1xf32>
    %170 = vector.broadcast %169 : vector<16x1xf32> to vector<16x128xf32>
    %171 = vector.broadcast %cst_85 : f32 to vector<16x128xf32>
    %172 = arith.select %168, %170, %171 : vector<16x128xi1>, vector<16x128xf32>
    %173 = vector.extract_strided_slice %172 {offsets = [0, 0], sizes = [8, 128], strides = [1, 1]} : vector<16x128xf32> to vector<8x128xf32>
    %174 = vector.extract_strided_slice %172 {offsets = [8, 0], sizes = [8, 128], strides = [1, 1]} : vector<16x128xf32> to vector<8x128xf32>
    %175 = arith.addf %173, %174 : vector<8x128xf32>
    %c0_86 = arith.constant 0 : index
    %c0_87 = arith.constant 0 : index
    %176 = vector.load %arg8[%c0_86, %c0_87] : memref<8x128xf32, #tpu.memory_space<vmem>>, vector<8x128xf32>
    tpu.vector_store %arg8[%c0_86, %c0_87], %175 {strides = array<i32>} : memref<8x128xf32, #tpu.memory_space<vmem>>, vector<8x128xf32>,
    return
  }
  func.func @transform_0(%arg0: i32) -> (i32, i32) {
    %c0_i32 = arith.constant 0 : i32
    %c0_i32_0 = arith.constant 0 : i32
    return %arg0, %c0_i32 : i32, i32
  }
  func.func @transform_1(%arg0: i32) -> (i32, i32) {
    %c0_i32 = arith.constant 0 : i32
    %c0_i32_0 = arith.constant 0 : i32
    return %arg0, %c0_i32 : i32, i32
  }
  func.func @transform_2(%arg0: i32) -> (i32, i32) {
    %c0_i32 = arith.constant 0 : i32
    %c0_i32_0 = arith.constant 0 : i32
    return %arg0, %c0_i32 : i32, i32
  }
  func.func @transform_3(%arg0: i32) -> (i32, i32) {
    %c0_i32 = arith.constant 0 : i32
    %c0_i32_0 = arith.constant 0 : i32
    %c0_i32_1 = arith.constant 0 : i32
    return %c0_i32, %c0_i32_0 : i32, i32
  }
  func.func @transform_4(%arg0: i32) -> (i32, i32, i32) {
    %c0_i32 = arith.constant 0 : i32
    %c0_i32_0 = arith.constant 0 : i32
    %c0_i32_1 = arith.constant 0 : i32
    %c0_i32_2 = arith.constant 0 : i32
    return %c0_i32, %c0_i32_0, %c0_i32_1 : i32, i32, i32
  }
  func.func @transform_5(%arg0: i32) -> (i32, i32, i32) {
    %c0_i32 = arith.constant 0 : i32
    %c0_i32_0 = arith.constant 0 : i32
    %c0_i32_1 = arith.constant 0 : i32
    %c0_i32_2 = arith.constant 0 : i32
    return %c0_i32, %c0_i32_0, %c0_i32_1 : i32, i32, i32
  }
  func.func @transform_6(%arg0: i32) -> (i32, i32) {
    %c0_i32 = arith.constant 0 : i32
    %c0_i32_0 = arith.constant 0 : i32
    %c0_i32_1 = arith.constant 0 : i32
    return %c0_i32, %c0_i32_0 : i32, i32
  }
  func.func @transform_7(%arg0: i32) -> (i32, i32) {
    %c0_i32 = arith.constant 0 : i32
    %c0_i32_0 = arith.constant 0 : i32
    return %arg0, %c0_i32 : i32, i32
  }
}

</mosaic_0001>

<llo_original>
// kernel: tpu_custom_call.1
$region0: #{tpu_custom_call.1}
  #allocation0 [shape = 'u32[]', space=smem, size = 0x4, offset = 0x4, fixed_abs, tag = 'smem constant byte address 0x4 - core index']
  #allocation1 [shape = 'u32[144,128]{1,0:T(1,128)}', space=vmem, size = 0x12000, scoped, tag = 'internal scratch']
  %s0 = inlined_call_operand.vmem [shape: f32[16,128], index: 0, kind: input, shape index: {}]
  %s1 = inlined_call_operand.vmem [shape: f32[16,4], index: 1, kind: input, shape index: {}]
  %s2 = inlined_call_operand.vmem [shape: s32[16,1], index: 2, kind: input, shape index: {}]
  %s3 = inlined_call_operand.hbm [shape: f32[128,1024], index: 3, kind: input, shape index: {}]
  %s4 = inlined_call_operand.hbm [shape: f32[4,256,256], index: 4, kind: input, shape index: {}]
  %s5 = inlined_call_operand.hbm [shape: f32[4,256,256], index: 5, kind: input, shape index: {}]
  %s6 = inlined_call_operand.vmem [shape: f32[4,256], index: 6, kind: input, shape index: {}]
  %s7 = inlined_call_operand.hbm [shape: f32[8,128], index: 7, kind: output, shape index: {}]
  %s8 = sld [smem:[#allocation0]]
  $region50: #{tpu_custom_call.1} parent=0
    _
  %s10 = ssub.s32 1, %s8
  %s11 = scalar_select 0, %s10, %s8
  $region1: #{tpu_custom_call.1} parent=0
    #allocation2 [shape = 'u8[524288]{0}', space=vmem, size = 0x80000, scoped, tag = 'input window, operand 3, single buffered']
    #allocation3 [shape = 's32[1]{0}', space=sflag, size = 0x4, scoped, tag = 'scoped memory for tpu_custom_call.1']
    #allocation4 [shape = 's32[1]{0}', space=sflag, size = 0x4, scoped, tag = 'scoped memory for tpu_custom_call.1']
    #allocation5 [shape = 'u8[1048576]{0}', space=vmem, size = 0x100000, scoped, tag = 'input window, operand 4, single buffered']
    #allocation6 [shape = 's32[1]{0}', space=sflag, size = 0x4, scoped, tag = 'scoped memory for tpu_custom_call.1']
    #allocation7 [shape = 'u8[1048576]{0}', space=vmem, size = 0x100000, scoped, tag = 'input window, operand 5, single buffered']
    #allocation8 [shape = 'u8[4096]{0}', space=vmem, size = 0x1000, scoped, tag = 'output window, operand 0, single buffered']
    %12 = vsyncpa [#allocation3], 0
    %13 = vsyncpa [#allocation6], 0
    %14 = vsyncpa [#allocation4], 0
    // Predicated region
    $region2: #{tpu_custom_call.1} parent=1 // pred_check
      _
    $region3: #{tpu_custom_call.1} parent=1 // pred_check_branch
      %16 = sbr.rel (0) target = $region5
    $region4: #{tpu_custom_call.1} parent=1 // pred_region
      _
    $region5: #{tpu_custom_call.1} parent=1 // pred_fallthru
      _
    // Predicated region
    $region6: #{tpu_custom_call.1} parent=1 // pred_check
      _
    $region7: #{tpu_custom_call.1} parent=1 // pred_check_branch
      %18 = sbr.rel (0) target = $region9
    $region8: #{tpu_custom_call.1} parent=1 // pred_region
      _
    $region9: #{tpu_custom_call.1} parent=1 // pred_fallthru
      _
    // Predicated region
    $region10: #{tpu_custom_call.1} parent=1 // pred_check
      _
    $region11: #{tpu_custom_call.1} parent=1 // pred_check_branch
      %20 = sbr.rel (0) target = $region13
    $region12: #{tpu_custom_call.1} parent=1 // pred_region
      _
    $region13: #{tpu_custom_call.1} parent=1 // pred_fallthru
      _
    // Predicated region
    $region14: #{tpu_custom_call.1} parent=1 // pred_check
      _
    $region15: #{tpu_custom_call.1} parent=1 // pred_check_branch
      %22 = sbr.rel (0) target = $region17
    $region16: #{tpu_custom_call.1} parent=1 // pred_region
      %s24 = ssub.s32 16384, 16384
      %25 = vsyncadd [#allocation3], %s24
      %s26 = sshll.u32 [#allocation2], 4
      %s27 = int_to_ptr.vmem [resolvable:$true] %s26
      %32 = dma.hbm_to_vmem [thread:$0]  %s3, 16384, %s27, [#allocation3], 1024, 1024, 64
    $region17: #{tpu_custom_call.1} parent=1 // pred_fallthru
      _
    // Predicated region
    $region18: #{tpu_custom_call.1} parent=1 // pred_check
      _
    $region19: #{tpu_custom_call.1} parent=1 // pred_check_branch
      %34 = sbr.rel (0) target = $region21
    $region20: #{tpu_custom_call.1} parent=1 // pred_region
      %s36 = ssub.s32 32768, 32768
      %37 = vsyncadd [#allocation6], %s36
      %s38 = sshll.u32 [#allocation5], 4
      %s39 = int_to_ptr.vmem [resolvable:$true] %s38
      %44 = dma.hbm_to_vmem [thread:$0]  %s4, 32768, %s39, [#allocation6], 256, 256, 16
    $region21: #{tpu_custom_call.1} parent=1 // pred_fallthru
      _
    // Predicated region
    $region22: #{tpu_custom_call.1} parent=1 // pred_check
      _
    $region23: #{tpu_custom_call.1} parent=1 // pred_check_branch
      %46 = sbr.rel (0) target = $region25
    $region24: #{tpu_custom_call.1} parent=1 // pred_region
      %s48 = ssub.s32 32768, 32768
      %49 = vsyncadd [#allocation6], %s48
      %s50 = sshll.u32 [#allocation7], 4
      %s51 = int_to_ptr.vmem [resolvable:$true] %s50
      %56 = dma.hbm_to_vmem [thread:$0]  %s5, 32768, %s51, [#allocation6], 256, 256, 16
    $region25: #{tpu_custom_call.1} parent=1 // pred_fallthru
      _
    // Predicated region
    $region26: #{tpu_custom_call.1} parent=1 // pred_check
      _
    $region27: #{tpu_custom_call.1} parent=1 // pred_check_branch
      %58 = sbr.rel (0) target = $region29
    $region28: #{tpu_custom_call.1} parent=1 // pred_region
      _
    $region29: #{tpu_custom_call.1} parent=1 // pred_fallthru
      _
    // Predicated region
    $region30: #{tpu_custom_call.1} parent=1 // pred_check
      _
    $region31: #{tpu_custom_call.1} parent=1 // pred_check_branch
      %60 = sbr.rel (0) target = $region33
    $region32: #{tpu_custom_call.1} parent=1 // pred_region
      %61 = dma.done [#allocation3], 16384
    $region33: #{tpu_custom_call.1} parent=1 // pred_fallthru
      _
    // Predicated region
    $region34: #{tpu_custom_call.1} parent=1 // pred_check
      _
    $region35: #{tpu_custom_call.1} parent=1 // pred_check_branch
      %63 = sbr.rel (0) target = $region37
    $region36: #{tpu_custom_call.1} parent=1 // pred_region
      %64 = dma.done [#allocation6], 32768
    $region37: #{tpu_custom_call.1} parent=1 // pred_fallthru
      _
    // Predicated region
    $region38: #{tpu_custom_call.1} parent=1 // pred_check
      _
    $region39: #{tpu_custom_call.1} parent=1 // pred_check_branch
      %66 = sbr.rel (0) target = $region41
    $region40: #{tpu_custom_call.1} parent=1 // pred_region
      %67 = dma.done [#allocation6], 32768
    $region41: #{tpu_custom_call.1} parent=1 // pred_fallthru
      _
    %v68 = vld [vmem:[%s0] sm:$0xff]
    %v69 = vld [vmem:[%s0 + $0x8] sm:$0xff]
    %v70 = vld [vmem:[%s1] sm:$0xff]
    %v71 = vld [vmem:[%s1 + $0x8] sm:$0xff]
    %v72 = vld [vmem:[#allocation2] sm:$0xff]
    %v73 = vld [vmem:[#allocation2 + $0x8] sm:$0xff]
    %v74 = vld [vmem:[#allocation2 + $0x10] sm:$0xff]
    %v75 = vld [vmem:[#allocation2 + $0x18] sm:$0xff]
    %v76 = vld [vmem:[#allocation2 + $0x20] sm:$0xff]
    %v77 = vld [vmem:[#allocation2 + $0x28] sm:$0xff]
    %v78 = vld [vmem:[#allocation2 + $0x30] sm:$0xff]
    %v79 = vld [vmem:[#allocation2 + $0x38] sm:$0xff]
    %v80 = vld [vmem:[#allocation2 + $0x40] sm:$0xff]
    %v81 = vld [vmem:[#allocation2 + $0x48] sm:$0xff]
    %v82 = vld [vmem:[#allocation2 + $0x50] sm:$0xff]
    %v83 = vld [vmem:[#allocation2 + $0x58] sm:$0xff]
    %v84 = vld [vmem:[#allocation2 + $0x60] sm:$0xff]
    %v85 = vld [vmem:[#allocation2 + $0x68] sm:$0xff]
    %v86 = vld [vmem:[#allocation2 + $0x70] sm:$0xff]
    %v87 = vld [vmem:[#allocation2 + $0x78] sm:$0xff]
    %v88 = vld [vmem:[#allocation2 + $0x80] sm:$0xff]
    %v89 = vld [vmem:[#allocation2 + $0x88] sm:$0xff]
    %v90 = vld [vmem:[#allocation2 + $0x90] sm:$0xff]
    %v91 = vld [vmem:[#allocation2 + $0x98] sm:$0xff]
    %v92 = vld [vmem:[#allocation2 + $0xa0] sm:$0xff]
    %v93 = vld [vmem:[#allocation2 + $0xa8] sm:$0xff]
    %v94 = vld [vmem:[#allocation2 + $0xb0] sm:$0xff]
    %v95 = vld [vmem:[#allocation2 + $0xb8] sm:$0xff]
    %v96 = vld [vmem:[#allocation2 + $0xc0] sm:$0xff]
    %v97 = vld [vmem:[#allocation2 + $0xc8] sm:$0xff]
    %v98 = vld [vmem:[#allocation2 + $0xd0] sm:$0xff]
    %v99 = vld [vmem:[#allocation2 + $0xd8] sm:$0xff]
    %v100 = vld [vmem:[#allocation2 + $0xe0] sm:$0xff]
    %v101 = vld [vmem:[#allocation2 + $0xe8] sm:$0xff]
    %v102 = vld [vmem:[#allocation2 + $0xf0] sm:$0xff]
    %v103 = vld [vmem:[#allocation2 + $0xf8] sm:$0xff]
    %v104 = vld [vmem:[#allocation2 + $0x100] sm:$0xff]
    %v105 = vld [vmem:[#allocation2 + $0x108] sm:$0xff]
    %v106 = vld [vmem:[#allocation2 + $0x110] sm:$0xff]
    %v107 = vld [vmem:[#allocation2 + $0x118] sm:$0xff]
    %v108 = vld [vmem:[#allocation2 + $0x120] sm:$0xff]
    %v109 = vld [vmem:[#allocation2 + $0x128] sm:$0xff]
    %v110 = vld [vmem:[#allocation2 + $0x130] sm:$0xff]
    %v111 = vld [vmem:[#allocation2 + $0x138] sm:$0xff]
    %v112 = vld [vmem:[#allocation2 + $0x140] sm:$0xff]
    %v113 = vld [vmem:[#allocation2 + $0x148] sm:$0xff]
    %v114 = vld [vmem:[#allocation2 + $0x150] sm:$0xff]
    %v115 = vld [vmem:[#allocation2 + $0x158] sm:$0xff]
    %v116 = vld [vmem:[#allocation2 + $0x160] sm:$0xff]
    %v117 = vld [vmem:[#allocation2 + $0x168] sm:$0xff]
    %v118 = vld [vmem:[#allocation2 + $0x170] sm:$0xff]
    %v119 = vld [vmem:[#allocation2 + $0x178] sm:$0xff]
    %v120 = vld [vmem:[#allocation2 + $0x180] sm:$0xff]
    %v121 = vld [vmem:[#allocation2 + $0x188] sm:$0xff]
    %v122 = vld [vmem:[#allocation2 + $0x190] sm:$0xff]
    %v123 = vld [vmem:[#allocation2 + $0x198] sm:$0xff]
    %v124 = vld [vmem:[#allocation2 + $0x1a0] sm:$0xff]
    %v125 = vld [vmem:[#allocation2 + $0x1a8] sm:$0xff]
    %v126 = vld [vmem:[#allocation2 + $0x1b0] sm:$0xff]
    %v127 = vld [vmem:[#allocation2 + $0x1b8] sm:$0xff]
    %v128 = vld [vmem:[#allocation2 + $0x1c0] sm:$0xff]
    %v129 = vld [vmem:[#allocation2 + $0x1c8] sm:$0xff]
    %v130 = vld [vmem:[#allocation2 + $0x1d0] sm:$0xff]
    %v131 = vld [vmem:[#allocation2 + $0x1d8] sm:$0xff]
    %v132 = vld [vmem:[#allocation2 + $0x1e0] sm:$0xff]
    %v133 = vld [vmem:[#allocation2 + $0x1e8] sm:$0xff]
    %v134 = vld [vmem:[#allocation2 + $0x1f0] sm:$0xff]
    %v135 = vld [vmem:[#allocation2 + $0x1f8] sm:$0xff]
    %v136 = vld [vmem:[#allocation2 + $0x200] sm:$0xff]
    %v137 = vld [vmem:[#allocation2 + $0x208] sm:$0xff]
    %v138 = vld [vmem:[#allocation2 + $0x210] sm:$0xff]
    %v139 = vld [vmem:[#allocation2 + $0x218] sm:$0xff]
    %v140 = vld [vmem:[#allocation2 + $0x220] sm:$0xff]
    %v141 = vld [vmem:[#allocation2 + $0x228] sm:$0xff]
    %v142 = vld [vmem:[#allocation2 + $0x230] sm:$0xff]
    %v143 = vld [vmem:[#allocation2 + $0x238] sm:$0xff]
    %v144 = vld [vmem:[#allocation2 + $0x240] sm:$0xff]
    %v145 = vld [vmem:[#allocation2 + $0x248] sm:$0xff]
    %v146 = vld [vmem:[#allocation2 + $0x250] sm:$0xff]
    %v147 = vld [vmem:[#allocation2 + $0x258] sm:$0xff]
    %v148 = vld [vmem:[#allocation2 + $0x260] sm:$0xff]
    %v149 = vld [vmem:[#allocation2 + $0x268] sm:$0xff]
    %v150 = vld [vmem:[#allocation2 + $0x270] sm:$0xff]
    %v151 = vld [vmem:[#allocation2 + $0x278] sm:$0xff]
    %v152 = vld [vmem:[#allocation2 + $0x280] sm:$0xff]
    %v153 = vld [vmem:[#allocation2 + $0x288] sm:$0xff]
    %v154 = vld [vmem:[#allocation2 + $0x290] sm:$0xff]
    %v155 = vld [vmem:[#allocation2 + $0x298] sm:$0xff]
    %v156 = vld [vmem:[#allocation2 + $0x2a0] sm:$0xff]
    %v157 = vld [vmem:[#allocation2 + $0x2a8] sm:$0xff]
    %v158 = vld [vmem:[#allocation2 + $0x2b0] sm:$0xff]
    %v159 = vld [vmem:[#allocation2 + $0x2b8] sm:$0xff]
    %v160 = vld [vmem:[#allocation2 + $0x2c0] sm:$0xff]
    %v161 = vld [vmem:[#allocation2 + $0x2c8] sm:$0xff]
    %v162 = vld [vmem:[#allocation2 + $0x2d0] sm:$0xff]
    %v163 = vld [vmem:[#allocation2 + $0x2d8] sm:$0xff]
    %v164 = vld [vmem:[#allocation2 + $0x2e0] sm:$0xff]
    %v165 = vld [vmem:[#allocation2 + $0x2e8] sm:$0xff]
    %v166 = vld [vmem:[#allocation2 + $0x2f0] sm:$0xff]
    %v167 = vld [vmem:[#allocation2 + $0x2f8] sm:$0xff]
    %v168 = vld [vmem:[#allocation2 + $0x300] sm:$0xff]
    %v169 = vld [vmem:[#allocation2 + $0x308] sm:$0xff]
    %v170 = vld [vmem:[#allocation2 + $0x310] sm:$0xff]
    %v171 = vld [vmem:[#allocation2 + $0x318] sm:$0xff]
    %v172 = vld [vmem:[#allocation2 + $0x320] sm:$0xff]
    %v173 = vld [vmem:[#allocation2 + $0x328] sm:$0xff]
    %v174 = vld [vmem:[#allocation2 + $0x330] sm:$0xff]
    %v175 = vld [vmem:[#allocation2 + $0x338] sm:$0xff]
    %v176 = vld [vmem:[#allocation2 + $0x340] sm:$0xff]
    %v177 = vld [vmem:[#allocation2 + $0x348] sm:$0xff]
    %v178 = vld [vmem:[#allocation2 + $0x350] sm:$0xff]
    %v179 = vld [vmem:[#allocation2 + $0x358] sm:$0xff]
    %v180 = vld [vmem:[#allocation2 + $0x360] sm:$0xff]
    %v181 = vld [vmem:[#allocation2 + $0x368] sm:$0xff]
    %v182 = vld [vmem:[#allocation2 + $0x370] sm:$0xff]
    %v183 = vld [vmem:[#allocation2 + $0x378] sm:$0xff]
    %v184 = vld [vmem:[#allocation2 + $0x380] sm:$0xff]
    %v185 = vld [vmem:[#allocation2 + $0x388] sm:$0xff]
    %v186 = vld [vmem:[#allocation2 + $0x390] sm:$0xff]
    %v187 = vld [vmem:[#allocation2 + $0x398] sm:$0xff]
    %v188 = vld [vmem:[#allocation2 + $0x3a0] sm:$0xff]
    %v189 = vld [vmem:[#allocation2 + $0x3a8] sm:$0xff]
    %v190 = vld [vmem:[#allocation2 + $0x3b0] sm:$0xff]
    %v191 = vld [vmem:[#allocation2 + $0x3b8] sm:$0xff]
    %v192 = vld [vmem:[#allocation2 + $0x3c0] sm:$0xff]
    %v193 = vld [vmem:[#allocation2 + $0x3c8] sm:$0xff]
    %v194 = vld [vmem:[#allocation2 + $0x3d0] sm:$0xff]
    %v195 = vld [vmem:[#allocation2 + $0x3d8] sm:$0xff]
    %v196 = vld [vmem:[#allocation2 + $0x3e0] sm:$0xff]
    %v197 = vld [vmem:[#allocation2 + $0x3e8] sm:$0xff]
    %v198 = vld [vmem:[#allocation2 + $0x3f0] sm:$0xff]
    %v199 = vld [vmem:[#allocation2 + $0x3f8] sm:$0xff]
    %200 = vmatprep.subr.mxu0 %v193
    %201 = vmatpush1.msra.mxu0 %v192
    %202 = vmatprep.subr.mxu0 %v185
    %203 = vmatpush1.msra.mxu0 %v184
    %204 = vmatprep.subr.mxu0 %v177
    %205 = vmatpush1.msra.mxu0 %v176
    %206 = vmatprep.subr.mxu0 %v169
    %207 = vmatpush1.msra.mxu0 %v168
    %208 = vmatprep.subr.mxu0 %v161
    %209 = vmatpush1.msra.mxu0 %v160
    %210 = vmatprep.subr.mxu0 %v153
    %211 = vmatpush1.msra.mxu0 %v152
    %212 = vmatprep.subr.mxu0 %v145
    %213 = vmatpush1.msra.mxu0 %v144
    %214 = vmatprep.subr.mxu0 %v137
    %215 = vmatpush1.msra.mxu0 %v136
    %216 = vmatprep.subr.mxu0 %v129
    %217 = vmatpush1.msra.mxu0 %v128
    %218 = vmatprep.subr.mxu0 %v121
    %219 = vmatpush1.msra.mxu0 %v120
    %220 = vmatprep.subr.mxu0 %v113
    %221 = vmatpush1.msra.mxu0 %v112
    %222 = vmatprep.subr.mxu0 %v105
    %223 = vmatpush1.msra.mxu0 %v104
    %224 = vmatprep.subr.mxu0 %v97
    %225 = vmatpush1.msra.mxu0 %v96
    %226 = vmatprep.subr.mxu0 %v89
    %227 = vmatpush1.msra.mxu0 %v88
    %228 = vmatprep.subr.mxu0 %v81
    %229 = vmatpush1.msra.mxu0 %v80
    %230 = vmatprep.subr.mxu0 %v73
    %231 = vmatpush1.msra.mxu0 %v72
    %232 = vmatprep.subr.mxu0 0.0
    %233 = vmatpush2.msra.mxu0 0.0
    %234 = vmatprep.subr.mxu0 0.0
    %235 = vmatpush2.msra.mxu0 0.0
    %236 = vmatprep.subr.mxu0 0.0
    %237 = vmatpush2.msra.mxu0 0.0
    %238 = vmatprep.subr.mxu0 0.0
    %239 = vmatpush2.msra.mxu0 0.0
    %240 = vmatprep.subr.mxu0 0.0
    %241 = vmatpush2.msra.mxu0 0.0
    %242 = vmatprep.subr.mxu0 0.0
    %243 = vmatpush2.msra.mxu0 0.0
    %244 = vmatprep.subr.mxu0 0.0
    %245 = vmatpush2.msra.mxu0 0.0
    %246 = vmatprep.subr.mxu0 0.0
    %247 = vmatpush2.msra.mxu0 0.0
    %248 = vmatprep.subr.mxu0 0.0
    %249 = vmatpush2.msra.mxu0 0.0
    %250 = vmatprep.subr.mxu0 0.0
    %251 = vmatpush2.msra.mxu0 0.0
    %252 = vmatprep.subr.mxu0 0.0
    %253 = vmatpush2.msra.mxu0 0.0
    %254 = vmatprep.subr.mxu0 0.0
    %255 = vmatpush2.msra.mxu0 0.0
    %256 = vmatprep.subr.mxu0 0.0
    %257 = vmatpush2.msra.mxu0 0.0
    %258 = vmatprep.subr.mxu0 0.0
    %259 = vmatpush2.msra.mxu0 0.0
    %260 = vmatprep.subr.mxu0 0.0
    %261 = vmatpush2.msra.mxu0 0.0
    %262 = vmatprep.subr.mxu0 0.0
    %263 = vmatpush2.msra.mxu0 0.0
    %264 = vmatprep.mubr.f32.mxu0 0.0
    %265 = vmatmul.mubr.f32.gmra.mxu0 %v68
    %v266 = vpop.f32.mrf.mxu0
    %v267 = vadd.f32 0.0, %v266
    %v268 = vpop.f32.mrf.mxu0
    %v269 = vadd.f32 0.0, %v268
    %270 = vmatprep.mubr.f32.mxu0 0.0
    %271 = vmatmul.mubr.f32.gmra.mxu0 %v69
    %v272 = vpop.f32.mrf.mxu0
    %v273 = vadd.f32 0.0, %v272
    %v274 = vpop.f32.mrf.mxu0
    %v275 = vadd.f32 0.0, %v274
    %276 = vdwg.mxu0
    %277 = vmatprep.subr.mxu0 %v195
    %278 = vmatpush1.msra.mxu0 %v194
    %279 = vmatprep.subr.mxu0 %v187
    %280 = vmatpush1.msra.mxu0 %v186
    %281 = vmatprep.subr.mxu0 %v179
    %282 = vmatpush1.msra.mxu0 %v178
    %283 = vmatprep.subr.mxu0 %v171
    %284 = vmatpush1.msra.mxu0 %v170
    %285 = vmatprep.subr.mxu0 %v163
    %286 = vmatpush1.msra.mxu0 %v162
    %287 = vmatprep.subr.mxu0 %v155
    %288 = vmatpush1.msra.mxu0 %v154
    %289 = vmatprep.subr.mxu0 %v147
    %290 = vmatpush1.msra.mxu0 %v146
    %291 = vmatprep.subr.mxu0 %v139
    %292 = vmatpush1.msra.mxu0 %v138
    %293 = vmatprep.subr.mxu0 %v131
    %294 = vmatpush1.msra.mxu0 %v130
    %295 = vmatprep.subr.mxu0 %v123
    %296 = vmatpush1.msra.mxu0 %v122
    %297 = vmatprep.subr.mxu0 %v115
    %298 = vmatpush1.msra.mxu0 %v114
    %299 = vmatprep.subr.mxu0 %v107
    %300 = vmatpush1.msra.mxu0 %v106
    %301 = vmatprep.subr.mxu0 %v99
    %302 = vmatpush1.msra.mxu0 %v98
    %303 = vmatprep.subr.mxu0 %v91
    %304 = vmatpush1.msra.mxu0 %v90
    %305 = vmatprep.subr.mxu0 %v83
    %306 = vmatpush1.msra.mxu0 %v82
    %307 = vmatprep.subr.mxu0 %v75
    %308 = vmatpush1.msra.mxu0 %v74
    %309 = vmatprep.subr.mxu0 0.0
    %310 = vmatpush2.msra.mxu0 0.0
    %311 = vmatprep.subr.mxu0 0.0
    %312 = vmatpush2.msra.mxu0 0.0
    %313 = vmatprep.subr.mxu0 0.0
    %314 = vmatpush2.msra.mxu0 0.0
    %315 = vmatprep.subr.mxu0 0.0
    %316 = vmatpush2.msra.mxu0 0.0
    %317 = vmatprep.subr.mxu0 0.0
    %318 = vmatpush2.msra.mxu0 0.0
    %319 = vmatprep.subr.mxu0 0.0
    %320 = vmatpush2.msra.mxu0 0.0
    %321 = vmatprep.subr.mxu0 0.0
    %322 = vmatpush2.msra.mxu0 0.0
    %323 = vmatprep.subr.mxu0 0.0
    %324 = vmatpush2.msra.mxu0 0.0
    %325 = vmatprep.subr.mxu0 0.0
    %326 = vmatpush2.msra.mxu0 0.0
    %327 = vmatprep.subr.mxu0 0.0
    %328 = vmatpush2.msra.mxu0 0.0
    %329 = vmatprep.subr.mxu0 0.0
    %330 = vmatpush2.msra.mxu0 0.0
    %331 = vmatprep.subr.mxu0 0.0
    %332 = vmatpush2.msra.mxu0 0.0
    %333 = vmatprep.subr.mxu0 0.0
    %334 = vmatpush2.msra.mxu0 0.0
    %335 = vmatprep.subr.mxu0 0.0
    %336 = vmatpush2.msra.mxu0 0.0
    %337 = vmatprep.subr.mxu0 0.0
    %338 = vmatpush2.msra.mxu0 0.0
    %339 = vmatprep.subr.mxu0 0.0
    %340 = vmatpush2.msra.mxu0 0.0
    %341 = vmatprep.mubr.f32.mxu0 0.0
    %342 = vmatmul.mubr.f32.gmra.mxu0 %v68
    %v343 = vpop.f32.mrf.mxu0
    %v344 = vadd.f32 0.0, %v343
    %v345 = vpop.f32.mrf.mxu0
    %v346 = vadd.f32 0.0, %v345
    %347 = vmatprep.mubr.f32.mxu0 0.0
    %348 = vmatmul.mubr.f32.gmra.mxu0 %v69
    %v349 = vpop.f32.mrf.mxu0
    %v350 = vadd.f32 0.0, %v349
    %v351 = vpop.f32.mrf.mxu0
    %v352 = vadd.f32 0.0, %v351
    %353 = vdwg.mxu0
    %354 = vmatprep.subr.mxu0 %v197
    %355 = vmatpush1.msra.mxu0 %v196
    %356 = vmatprep.subr.mxu0 %v189
    %357 = vmatpush1.msra.mxu0 %v188
    %358 = vmatprep.subr.mxu0 %v181
    %359 = vmatpush1.msra.mxu0 %v180
    %360 = vmatprep.subr.mxu0 %v173
    %361 = vmatpush1.msra.mxu0 %v172
    %362 = vmatprep.subr.mxu0 %v165
    %363 = vmatpush1.msra.mxu0 %v164
    %364 = vmatprep.subr.mxu0 %v157
    %365 = vmatpush1.msra.mxu0 %v156
    %366 = vmatprep.subr.mxu0 %v149
    %367 = vmatpush1.msra.mxu0 %v148
    %368 = vmatprep.subr.mxu0 %v141
    %369 = vmatpush1.msra.mxu0 %v140
    %370 = vmatprep.subr.mxu0 %v133
    %371 = vmatpush1.msra.mxu0 %v132
    %372 = vmatprep.subr.mxu0 %v125
    %373 = vmatpush1.msra.mxu0 %v124
    %374 = vmatprep.subr.mxu0 %v117
    %375 = vmatpush1.msra.mxu0 %v116
    %376 = vmatprep.subr.mxu0 %v109
    %377 = vmatpush1.msra.mxu0 %v108
    %378 = vmatprep.subr.mxu0 %v101
    %379 = vmatpush1.msra.mxu0 %v100
    %380 = vmatprep.subr.mxu0 %v93
    %381 = vmatpush1.msra.mxu0 %v92
    %382 = vmatprep.subr.mxu0 %v85
    %383 = vmatpush1.msra.mxu0 %v84
    %384 = vmatprep.subr.mxu0 %v77
    %385 = vmatpush1.msra.mxu0 %v76
    %386 = vmatprep.subr.mxu0 0.0
    %387 = vmatpush2.msra.mxu0 0.0
    %388 = vmatprep.subr.mxu0 0.0
    %389 = vmatpush2.msra.mxu0 0.0
    %390 = vmatprep.subr.mxu0 0.0
    %391 = vmatpush2.msra.mxu0 0.0
    %392 = vmatprep.subr.mxu0 0.0
    %393 = vmatpush2.msra.mxu0 0.0
    %394 = vmatprep.subr.mxu0 0.0
    %395 = vmatpush2.msra.mxu0 0.0
    %396 = vmatprep.subr.mxu0 0.0
    %397 = vmatpush2.msra.mxu0 0.0
    %398 = vmatprep.subr.mxu0 0.0
    %399 = vmatpush2.msra.mxu0 0.0
    %400 = vmatprep.subr.mxu0 0.0
    %401 = vmatpush2.msra.mxu0 0.0
    %402 = vmatprep.subr.mxu0 0.0
    %403 = vmatpush2.msra.mxu0 0.0
    %404 = vmatprep.subr.mxu0 0.0
    %405 = vmatpush2.msra.mxu0 0.0
    %406 = vmatprep.subr.mxu0 0.0
    %407 = vmatpush2.msra.mxu0 0.0
    %408 = vmatprep.subr.mxu0 0.0
    %409 = vmatpush2.msra.mxu0 0.0
    %410 = vmatprep.subr.mxu0 0.0
    %411 = vmatpush2.msra.mxu0 0.0
    %412 = vmatprep.subr.mxu0 0.0
    %413 = vmatpush2.msra.mxu0 0.0
    %414 = vmatprep.subr.mxu0 0.0
    %415 = vmatpush2.msra.mxu0 0.0
    %416 = vmatprep.subr.mxu0 0.0
    %417 = vmatpush2.msra.mxu0 0.0
    %418 = vmatprep.mubr.f32.mxu0 0.0
    %419 = vmatmul.mubr.f32.gmra.mxu0 %v68
    %v420 = vpop.f32.mrf.mxu0
    %v421 = vadd.f32 0.0, %v420
    %v422 = vpop.f32.mrf.mxu0
    %v423 = vadd.f32 0.0, %v422
    %424 = vmatprep.mubr.f32.mxu0 0.0
    %425 = vmatmul.mubr.f32.gmra.mxu0 %v69
    %v426 = vpop.f32.mrf.mxu0
    %v427 = vadd.f32 0.0, %v426
    %v428 = vpop.f32.mrf.mxu0
    %v429 = vadd.f32 0.0, %v428
    %430 = vdwg.mxu0
    %431 = vmatprep.subr.mxu0 %v199
    %432 = vmatpush1.msra.mxu0 %v198
    %433 = vmatprep.subr.mxu0 %v191
    %434 = vmatpush1.msra.mxu0 %v190
    %435 = vmatprep.subr.mxu0 %v183
    %436 = vmatpush1.msra.mxu0 %v182
    %437 = vmatprep.subr.mxu0 %v175
    %438 = vmatpush1.msra.mxu0 %v174
    %439 = vmatprep.subr.mxu0 %v167
    %440 = vmatpush1.msra.mxu0 %v166
    %441 = vmatprep.subr.mxu0 %v159
    %442 = vmatpush1.msra.mxu0 %v158
    %443 = vmatprep.subr.mxu0 %v151
    %444 = vmatpush1.msra.mxu0 %v150
    %445 = vmatprep.subr.mxu0 %v143
    %446 = vmatpush1.msra.mxu0 %v142
    %447 = vmatprep.subr.mxu0 %v135
    %448 = vmatpush1.msra.mxu0 %v134
    %449 = vmatprep.subr.mxu0 %v127
    %450 = vmatpush1.msra.mxu0 %v126
    %451 = vmatprep.subr.mxu0 %v119
    %452 = vmatpush1.msra.mxu0 %v118
    %453 = vmatprep.subr.mxu0 %v111
    %454 = vmatpush1.msra.mxu0 %v110
    %455 = vmatprep.subr.mxu0 %v103
    %456 = vmatpush1.msra.mxu0 %v102
    %457 = vmatprep.subr.mxu0 %v95
    %458 = vmatpush1.msra.mxu0 %v94
    %459 = vmatprep.subr.mxu0 %v87
    %460 = vmatpush1.msra.mxu0 %v86
    %461 = vmatprep.subr.mxu0 %v79
    %462 = vmatpush1.msra.mxu0 %v78
    %463 = vmatprep.subr.mxu0 0.0
    %464 = vmatpush2.msra.mxu0 0.0
    %465 = vmatprep.subr.mxu0 0.0
    %466 = vmatpush2.msra.mxu0 0.0
    %467 = vmatprep.subr.mxu0 0.0
    %468 = vmatpush2.msra.mxu0 0.0
    %469 = vmatprep.subr.mxu0 0.0
    %470 = vmatpush2.msra.mxu0 0.0
    %471 = vmatprep.subr.mxu0 0.0
    %472 = vmatpush2.msra.mxu0 0.0
    %473 = vmatprep.subr.mxu0 0.0
    %474 = vmatpush2.msra.mxu0 0.0
    %475 = vmatprep.subr.mxu0 0.0
    %476 = vmatpush2.msra.mxu0 0.0
    %477 = vmatprep.subr.mxu0 0.0
    %478 = vmatpush2.msra.mxu0 0.0
    %479 = vmatprep.subr.mxu0 0.0
    %480 = vmatpush2.msra.mxu0 0.0
    %481 = vmatprep.subr.mxu0 0.0
    %482 = vmatpush2.msra.mxu0 0.0
    %483 = vmatprep.subr.mxu0 0.0
    %484 = vmatpush2.msra.mxu0 0.0
    %485 = vmatprep.subr.mxu0 0.0
    %486 = vmatpush2.msra.mxu0 0.0
    %487 = vmatprep.subr.mxu0 0.0
    %488 = vmatpush2.msra.mxu0 0.0
    %489 = vmatprep.subr.mxu0 0.0
    %490 = vmatpush2.msra.mxu0 0.0
    %491 = vmatprep.subr.mxu0 0.0
    %492 = vmatpush2.msra.mxu0 0.0
    %493 = vmatprep.subr.mxu0 0.0
    %494 = vmatpush2.msra.mxu0 0.0
    %495 = vmatprep.mubr.f32.mxu0 0.0
    %496 = vmatmul.mubr.f32.gmra.mxu0 %v68
    %v497 = vpop.f32.mrf.mxu0
    %v498 = vadd.f32 0.0, %v497
    %v499 = vpop.f32.mrf.mxu0
    %v500 = vadd.f32 0.0, %v499
    %501 = vmatprep.mubr.f32.mxu0 0.0
    %502 = vmatmul.mubr.f32.gmra.mxu0 %v69
    %v503 = vpop.f32.mrf.mxu0
    %v504 = vadd.f32 0.0, %v503
    %v505 = vpop.f32.mrf.mxu0
    %v506 = vadd.f32 0.0, %v505
    %507 = vdwg.mxu0
    %509 = vset.pattern.permute.xlu0 0
    %510 = vperm.xlu0 %509, %v70
    %v511 = vpop.permute.xlu0 %510
    %514 = vset.pattern.permute.xlu0 0
    %515 = vperm.xlu0 %514, %v71
    %v516 = vpop.permute.xlu0 %515
    %v518 = vmul.f32 %v267, %v511
    %v519 = vmul.f32 %v269, %v511
    %v520 = vmul.f32 %v273, %v516
    %v521 = vmul.f32 %v275, %v516
    %v522 = vmul.f32 %v518, 0.5
    %v523 = vmul.f32 %v519, 0.5
    %v524 = vmul.f32 %v520, 0.5
    %v525 = vmul.f32 %v521, 0.5
    %v526 = vtanh.pop %v522
    %v527 = vtanh.pop %v523
    %v528 = vtanh.pop %v524
    %v529 = vtanh.pop %v525
    %v530 = vadd.f32 %v526, 1.0
    %v531 = vadd.f32 %v527, 1.0
    %v532 = vadd.f32 %v528, 1.0
    %v533 = vadd.f32 %v529, 1.0
    %v534 = vmul.f32 %v522, %v530
    %v535 = vmul.f32 %v523, %v531
    %v536 = vmul.f32 %v524, %v532
    %v537 = vmul.f32 %v525, %v533
    %v538 = vld [vmem:[#allocation5] sm:$0xff]
    %v539 = vld [vmem:[#allocation5 + $0x8] sm:$0xff]
    %v540 = vld [vmem:[#allocation5 + $0x10] sm:$0xff]
    %v541 = vld [vmem:[#allocation5 + $0x18] sm:$0xff]
    %v542 = vld [vmem:[#allocation5 + $0x20] sm:$0xff]
    %v543 = vld [vmem:[#allocation5 + $0x28] sm:$0xff]
    %v544 = vld [vmem:[#allocation5 + $0x30] sm:$0xff]
    %v545 = vld [vmem:[#allocation5 + $0x38] sm:$0xff]
    %v546 = vld [vmem:[#allocation5 + $0x40] sm:$0xff]
    %v547 = vld [vmem:[#allocation5 + $0x48] sm:$0xff]
    %v548 = vld [vmem:[#allocation5 + $0x50] sm:$0xff]
    %v549 = vld [vmem:[#allocation5 + $0x58] sm:$0xff]
    %v550 = vld [vmem:[#allocation5 + $0x60] sm:$0xff]
    %v551 = vld [vmem:[#allocation5 + $0x68] sm:$0xff]
    %v552 = vld [vmem:[#allocation5 + $0x70] sm:$0xff]
    %v553 = vld [vmem:[#allocation5 + $0x78] sm:$0xff]
    %v554 = vld [vmem:[#allocation5 + $0x80] sm:$0xff]
    %v555 = vld [vmem:[#allocation5 + $0x88] sm:$0xff]
    %v556 = vld [vmem:[#allocation5 + $0x90] sm:$0xff]
    %v557 = vld [vmem:[#allocation5 + $0x98] sm:$0xff]
    %v558 = vld [vmem:[#allocation5 + $0xa0] sm:$0xff]
    %v559 = vld [vmem:[#allocation5 + $0xa8] sm:$0xff]
    %v560 = vld [vmem:[#allocation5 + $0xb0] sm:$0xff]
    %v561 = vld [vmem:[#allocation5 + $0xb8] sm:$0xff]
    %v562 = vld [vmem:[#allocation5 + $0xc0] sm:$0xff]
    %v563 = vld [vmem:[#allocation5 + $0xc8] sm:$0xff]
    %v564 = vld [vmem:[#allocation5 + $0xd0] sm:$0xff]
    %v565 = vld [vmem:[#allocation5 + $0xd8] sm:$0xff]
    %v566 = vld [vmem:[#allocation5 + $0xe0] sm:$0xff]
    %v567 = vld [vmem:[#allocation5 + $0xe8] sm:$0xff]
    %v568 = vld [vmem:[#allocation5 + $0xf0] sm:$0xff]
    %v569 = vld [vmem:[#allocation5 + $0xf8] sm:$0xff]
    %v570 = vld [vmem:[#allocation5 + $0x100] sm:$0xff]
    %v571 = vld [vmem:[#allocation5 + $0x108] sm:$0xff]
    %v572 = vld [vmem:[#allocation5 + $0x110] sm:$0xff]
    %v573 = vld [vmem:[#allocation5 + $0x118] sm:$0xff]
    %v574 = vld [vmem:[#allocation5 + $0x120] sm:$0xff]
    %v575 = vld [vmem:[#allocation5 + $0x128] sm:$0xff]
    %v576 = vld [vmem:[#allocation5 + $0x130] sm:$0xff]
    %v577 = vld [vmem:[#allocation5 + $0x138] sm:$0xff]
    %v578 = vld [vmem:[#allocation5 + $0x140] sm:$0xff]
    %v579 = vld [vmem:[#allocation5 + $0x148] sm:$0xff]
    %v580 = vld [vmem:[#allocation5 + $0x150] sm:$0xff]
    %v581 = vld [vmem:[#allocation5 + $0x158] sm:$0xff]
    %v582 = vld [vmem:[#allocation5 + $0x160] sm:$0xff]
    %v583 = vld [vmem:[#allocation5 + $0x168] sm:$0xff]
    %v584 = vld [vmem:[#allocation5 + $0x170] sm:$0xff]
    %v585 = vld [vmem:[#allocation5 + $0x178] sm:$0xff]
    %v586 = vld [vmem:[#allocation5 + $0x180] sm:$0xff]
    %v587 = vld [vmem:[#allocation5 + $0x188] sm:$0xff]
    %v588 = vld [vmem:[#allocation5 + $0x190] sm:$0xff]
    %v589 = vld [vmem:[#allocation5 + $0x198] sm:$0xff]
    %v590 = vld [vmem:[#allocation5 + $0x1a0] sm:$0xff]
    %v591 = vld [vmem:[#allocation5 + $0x1a8] sm:$0xff]
    %v592 = vld [vmem:[#allocation5 + $0x1b0] sm:$0xff]
    %v593 = vld [vmem:[#allocation5 + $0x1b8] sm:$0xff]
    %v594 = vld [vmem:[#allocation5 + $0x1c0] sm:$0xff]
    %v595 = vld [vmem:[#allocation5 + $0x1c8] sm:$0xff]
    %v596 = vld [vmem:[#allocation5 + $0x1d0] sm:$0xff]
    %v597 = vld [vmem:[#allocation5 + $0x1d8] sm:$0xff]
    %v598 = vld [vmem:[#allocation5 + $0x1e0] sm:$0xff]
    %v599 = vld [vmem:[#allocation5 + $0x1e8] sm:$0xff]
    %v600 = vld [vmem:[#allocation5 + $0x1f0] sm:$0xff]
    %v601 = vld [vmem:[#allocation5 + $0x1f8] sm:$0xff]
    %602 = vmatprep.subr.mxu0 %v569
    %603 = vmatpush1.msra.mxu0 %v568
    %604 = vmatprep.subr.mxu0 %v567
    %605 = vmatpush1.msra.mxu0 %v566
    %606 = vmatprep.subr.mxu0 %v565
    %607 = vmatpush1.msra.mxu0 %v564
    %608 = vmatprep.subr.mxu0 %v563
    %609 = vmatpush1.msra.mxu0 %v562
    %610 = vmatprep.subr.mxu0 %v561
    %611 = vmatpush1.msra.mxu0 %v560
    %612 = vmatprep.subr.mxu0 %v559
    %613 = vmatpush1.msra.mxu0 %v558
    %614 = vmatprep.subr.mxu0 %v557
    %615 = vmatpush1.msra.mxu0 %v556
    %616 = vmatprep.subr.mxu0 %v555
    %617 = vmatpush1.msra.mxu0 %v554
    %618 = vmatprep.subr.mxu0 %v553
    %619 = vmatpush1.msra.mxu0 %v552
    %620 = vmatprep.subr.mxu0 %v551
    %621 = vmatpush1.msra.mxu0 %v550
    %622 = vmatprep.subr.mxu0 %v549
    %623 = vmatpush1.msra.mxu0 %v548
    %624 = vmatprep.subr.mxu0 %v547
    %625 = vmatpush1.msra.mxu0 %v546
    %626 = vmatprep.subr.mxu0 %v545
    %627 = vmatpush1.msra.mxu0 %v544
    %628 = vmatprep.subr.mxu0 %v543
    %629 = vmatpush1.msra.mxu0 %v542
    %630 = vmatprep.subr.mxu0 %v541
    %631 = vmatpush1.msra.mxu0 %v540
    %632 = vmatprep.subr.mxu0 %v539
    %633 = vmatpush1.msra.mxu0 %v538
    %634 = vmatprep.subr.mxu0 %v601
    %635 = vmatpush2.msra.mxu0 %v600
    %636 = vmatprep.subr.mxu0 %v599
    %637 = vmatpush2.msra.mxu0 %v598
    %638 = vmatprep.subr.mxu0 %v597
    %639 = vmatpush2.msra.mxu0 %v596
    %640 = vmatprep.subr.mxu0 %v595
    %641 = vmatpush2.msra.mxu0 %v594
    %642 = vmatprep.subr.mxu0 %v593
    %643 = vmatpush2.msra.mxu0 %v592
    %644 = vmatprep.subr.mxu0 %v591
    %645 = vmatpush2.msra.mxu0 %v590
    %646 = vmatprep.subr.mxu0 %v589
    %647 = vmatpush2.msra.mxu0 %v588
    %648 = vmatprep.subr.mxu0 %v587
    %649 = vmatpush2.msra.mxu0 %v586
    %650 = vmatprep.subr.mxu0 %v585
    %651 = vmatpush2.msra.mxu0 %v584
    %652 = vmatprep.subr.mxu0 %v583
    %653 = vmatpush2.msra.mxu0 %v582
    %654 = vmatprep.subr.mxu0 %v581
    %655 = vmatpush2.msra.mxu0 %v580
    %656 = vmatprep.subr.mxu0 %v579
    %657 = vmatpush2.msra.mxu0 %v578
    %658 = vmatprep.subr.mxu0 %v577
    %659 = vmatpush2.msra.mxu0 %v576
    %660 = vmatprep.subr.mxu0 %v575
    %661 = vmatpush2.msra.mxu0 %v574
    %662 = vmatprep.subr.mxu0 %v573
    %663 = vmatpush2.msra.mxu0 %v572
    %664 = vmatprep.subr.mxu0 %v571
    %665 = vmatpush2.msra.mxu0 %v570
    %666 = vmatprep.mubr.f32.mxu0 %v535
    %667 = vmatmul.mubr.f32.gmra.mxu0 %v534
    %v668 = vpop.f32.mrf.mxu0
    %v669 = vadd.f32 0.0, %v668
    %v670 = vpop.f32.mrf.mxu0
    %v671 = vadd.f32 0.0, %v670
    %672 = vmatprep.mubr.f32.mxu0 %v537
    %673 = vmatmul.mubr.f32.gmra.mxu0 %v536
    %v674 = vpop.f32.mrf.mxu0
    %v675 = vadd.f32 0.0, %v674
    %v676 = vpop.f32.mrf.mxu0
    %v677 = vadd.f32 0.0, %v676
    %678 = vdwg.mxu0
    %v679 = vmul.f32 %v669, 0.5
    %v680 = vmul.f32 %v671, 0.5
    %v681 = vmul.f32 %v675, 0.5
    %v682 = vmul.f32 %v677, 0.5
    %v683 = vtanh.pop %v679
    %v684 = vtanh.pop %v680
    %v685 = vtanh.pop %v681
    %v686 = vtanh.pop %v682
    %v687 = vadd.f32 %v683, 1.0
    %v688 = vadd.f32 %v684, 1.0
    %v689 = vadd.f32 %v685, 1.0
    %v690 = vadd.f32 %v686, 1.0
    %v691 = vmul.f32 %v679, %v687
    %v692 = vmul.f32 %v680, %v688
    %v693 = vmul.f32 %v681, %v689
    %v694 = vmul.f32 %v682, %v690
    %v695 = vld [vmem:[#allocation7] sm:$0xff]
    %v696 = vld [vmem:[#allocation7 + $0x8] sm:$0xff]
    %v697 = vld [vmem:[#allocation7 + $0x10] sm:$0xff]
    %v698 = vld [vmem:[#allocation7 + $0x18] sm:$0xff]
    %v699 = vld [vmem:[#allocation7 + $0x20] sm:$0xff]
    %v700 = vld [vmem:[#allocation7 + $0x28] sm:$0xff]
    %v701 = vld [vmem:[#allocation7 + $0x30] sm:$0xff]
    %v702 = vld [vmem:[#allocation7 + $0x38] sm:$0xff]
    %v703 = vld [vmem:[#allocation7 + $0x40] sm:$0xff]
    %v704 = vld [vmem:[#allocation7 + $0x48] sm:$0xff]
    %v705 = vld [vmem:[#allocation7 + $0x50] sm:$0xff]
    %v706 = vld [vmem:[#allocation7 + $0x58] sm:$0xff]
    %v707 = vld [vmem:[#allocation7 + $0x60] sm:$0xff]
    %v708 = vld [vmem:[#allocation7 + $0x68] sm:$0xff]
    %v709 = vld [vmem:[#allocation7 + $0x70] sm:$0xff]
    %v710 = vld [vmem:[#allocation7 + $0x78] sm:$0xff]
    %v711 = vld [vmem:[#allocation7 + $0x80] sm:$0xff]
    %v712 = vld [vmem:[#allocation7 + $0x88] sm:$0xff]
    %v713 = vld [vmem:[#allocation7 + $0x90] sm:$0xff]
    %v714 = vld [vmem:[#allocation7 + $0x98] sm:$0xff]
    %v715 = vld [vmem:[#allocation7 + $0xa0] sm:$0xff]
    %v716 = vld [vmem:[#allocation7 + $0xa8] sm:$0xff]
    %v717 = vld [vmem:[#allocation7 + $0xb0] sm:$0xff]
    %v718 = vld [vmem:[#allocation7 + $0xb8] sm:$0xff]
    %v719 = vld [vmem:[#allocation7 + $0xc0] sm:$0xff]
    %v720 = vld [vmem:[#allocation7 + $0xc8] sm:$0xff]
    %v721 = vld [vmem:[#allocation7 + $0xd0] sm:$0xff]
    %v722 = vld [vmem:[#allocation7 + $0xd8] sm:$0xff]
    %v723 = vld [vmem:[#allocation7 + $0xe0] sm:$0xff]
    %v724 = vld [vmem:[#allocation7 + $0xe8] sm:$0xff]
    %v725 = vld [vmem:[#allocation7 + $0xf0] sm:$0xff]
    %v726 = vld [vmem:[#allocation7 + $0xf8] sm:$0xff]
    %v727 = vld [vmem:[#allocation7 + $0x100] sm:$0xff]
    %v728 = vld [vmem:[#allocation7 + $0x108] sm:$0xff]
    %v729 = vld [vmem:[#allocation7 + $0x110] sm:$0xff]
    %v730 = vld [vmem:[#allocation7 + $0x118] sm:$0xff]
    %v731 = vld [vmem:[#allocation7 + $0x120] sm:$0xff]
    %v732 = vld [vmem:[#allocation7 + $0x128] sm:$0xff]
    %v733 = vld [vmem:[#allocation7 + $0x130] sm:$0xff]
    %v734 = vld [vmem:[#allocation7 + $0x138] sm:$0xff]
    %v735 = vld [vmem:[#allocation7 + $0x140] sm:$0xff]
    %v736 = vld [vmem:[#allocation7 + $0x148] sm:$0xff]
    %v737 = vld [vmem:[#allocation7 + $0x150] sm:$0xff]
    %v738 = vld [vmem:[#allocation7 + $0x158] sm:$0xff]
    %v739 = vld [vmem:[#allocation7 + $0x160] sm:$0xff]
    %v740 = vld [vmem:[#allocation7 + $0x168] sm:$0xff]
    %v741 = vld [vmem:[#allocation7 + $0x170] sm:$0xff]
    %v742 = vld [vmem:[#allocation7 + $0x178] sm:$0xff]
    %v743 = vld [vmem:[#allocation7 + $0x180] sm:$0xff]
    %v744 = vld [vmem:[#allocation7 + $0x188] sm:$0xff]
    %v745 = vld [vmem:[#allocation7 + $0x190] sm:$0xff]
    %v746 = vld [vmem:[#allocation7 + $0x198] sm:$0xff]
    %v747 = vld [vmem:[#allocation7 + $0x1a0] sm:$0xff]
    %v748 = vld [vmem:[#allocation7 + $0x1a8] sm:$0xff]
    %v749 = vld [vmem:[#allocation7 + $0x1b0] sm:$0xff]
    %v750 = vld [vmem:[#allocation7 + $0x1b8] sm:$0xff]
    %v751 = vld [vmem:[#allocation7 + $0x1c0] sm:$0xff]
    %v752 = vld [vmem:[#allocation7 + $0x1c8] sm:$0xff]
    %v753 = vld [vmem:[#allocation7 + $0x1d0] sm:$0xff]
    %v754 = vld [vmem:[#allocation7 + $0x1d8] sm:$0xff]
    %v755 = vld [vmem:[#allocation7 + $0x1e0] sm:$0xff]
    %v756 = vld [vmem:[#allocation7 + $0x1e8] sm:$0xff]
    %v757 = vld [vmem:[#allocation7 + $0x1f0] sm:$0xff]
    %v758 = vld [vmem:[#allocation7 + $0x1f8] sm:$0xff]
    %759 = vmatprep.subr.mxu0 %v726
    %760 = vmatpush1.msra.mxu0 %v725
    %761 = vmatprep.subr.mxu0 %v724
    %762 = vmatpush1.msra.mxu0 %v723
    %763 = vmatprep.subr.mxu0 %v722
    %764 = vmatpush1.msra.mxu0 %v721
    %765 = vmatprep.subr.mxu0 %v720
    %766 = vmatpush1.msra.mxu0 %v719
    %767 = vmatprep.subr.mxu0 %v718
    %768 = vmatpush1.msra.mxu0 %v717
    %769 = vmatprep.subr.mxu0 %v716
    %770 = vmatpush1.msra.mxu0 %v715
    %771 = vmatprep.subr.mxu0 %v714
    %772 = vmatpush1.msra.mxu0 %v713
    %773 = vmatprep.subr.mxu0 %v712
    %774 = vmatpush1.msra.mxu0 %v711
    %775 = vmatprep.subr.mxu0 %v710
    %776 = vmatpush1.msra.mxu0 %v709
    %777 = vmatprep.subr.mxu0 %v708
    %778 = vmatpush1.msra.mxu0 %v707
    %779 = vmatprep.subr.mxu0 %v706
    %780 = vmatpush1.msra.mxu0 %v705
    %781 = vmatprep.subr.mxu0 %v704
    %782 = vmatpush1.msra.mxu0 %v703
    %783 = vmatprep.subr.mxu0 %v702
    %784 = vmatpush1.msra.mxu0 %v701
    %785 = vmatprep.subr.mxu0 %v700
    %786 = vmatpush1.msra.mxu0 %v699
    %787 = vmatprep.subr.mxu0 %v698
    %788 = vmatpush1.msra.mxu0 %v697
    %789 = vmatprep.subr.mxu0 %v696
    %790 = vmatpush1.msra.mxu0 %v695
    %791 = vmatprep.subr.mxu0 %v758
    %792 = vmatpush2.msra.mxu0 %v757
    %793 = vmatprep.subr.mxu0 %v756
    %794 = vmatpush2.msra.mxu0 %v755
    %795 = vmatprep.subr.mxu0 %v754
    %796 = vmatpush2.msra.mxu0 %v753
    %797 = vmatprep.subr.mxu0 %v752
    %798 = vmatpush2.msra.mxu0 %v751
    %799 = vmatprep.subr.mxu0 %v750
    %800 = vmatpush2.msra.mxu0 %v749
    %801 = vmatprep.subr.mxu0 %v748
    %802 = vmatpush2.msra.mxu0 %v747
    %803 = vmatprep.subr.mxu0 %v746
    %804 = vmatpush2.msra.mxu0 %v745
    %805 = vmatprep.subr.mxu0 %v744
    %806 = vmatpush2.msra.mxu0 %v743
    %807 = vmatprep.subr.mxu0 %v742
    %808 = vmatpush2.msra.mxu0 %v741
    %809 = vmatprep.subr.mxu0 %v740
    %810 = vmatpush2.msra.mxu0 %v739
    %811 = vmatprep.subr.mxu0 %v738
    %812 = vmatpush2.msra.mxu0 %v737
    %813 = vmatprep.subr.mxu0 %v736
    %814 = vmatpush2.msra.mxu0 %v735
    %815 = vmatprep.subr.mxu0 %v734
    %816 = vmatpush2.msra.mxu0 %v733
    %817 = vmatprep.subr.mxu0 %v732
    %818 = vmatpush2.msra.mxu0 %v731
    %819 = vmatprep.subr.mxu0 %v730
    %820 = vmatpush2.msra.mxu0 %v729
    %821 = vmatprep.subr.mxu0 %v728
    %822 = vmatpush2.msra.mxu0 %v727
    %823 = vmatprep.mubr.f32.mxu0 %v692
    %824 = vmatmul.mubr.f32.gmra.mxu0 %v691
    %v825 = vpop.f32.mrf.mxu0
    %v826 = vadd.f32 0.0, %v825
    %v827 = vpop.f32.mrf.mxu0
    %v828 = vadd.f32 0.0, %v827
    %829 = vmatprep.mubr.f32.mxu0 %v694
    %830 = vmatmul.mubr.f32.gmra.mxu0 %v693
    %v831 = vpop.f32.mrf.mxu0
    %v832 = vadd.f32 0.0, %v831
    %v833 = vpop.f32.mrf.mxu0
    %v834 = vadd.f32 0.0, %v833
    %835 = vdwg.mxu0
    %v836 = vmul.f32 %v826, 0.5
    %v837 = vmul.f32 %v828, 0.5
    %v838 = vmul.f32 %v832, 0.5
    %v839 = vmul.f32 %v834, 0.5
    %v840 = vtanh.pop %v836
    %v841 = vtanh.pop %v837
    %v842 = vtanh.pop %v838
    %v843 = vtanh.pop %v839
    %v844 = vadd.f32 %v840, 1.0
    %v845 = vadd.f32 %v841, 1.0
    %v846 = vadd.f32 %v842, 1.0
    %v847 = vadd.f32 %v843, 1.0
    %v848 = vmul.f32 %v836, %v844
    %v849 = vmul.f32 %v837, %v845
    %v850 = vmul.f32 %v838, %v846
    %v851 = vmul.f32 %v839, %v847
    %v852 = vld [vmem:[%s6] ss:$4 sm:$0x3]
    %v854 = vlaneseq
    %v855 = vshrl.u32 %v854, 7
    %v856 = vsub.s32 0, %v855
    %v857 = vrot.slane %v852, %v856
    %v858 = vlaneseq
    %v859 = vshrl.u32 %v858, 7
    %v860 = vsub.s32 1, %v859
    %v861 = vrot.slane %v852, %v860
    %v864 = vmul.f32 %v848, %v857
    %v865 = vmul.f32 %v849, %v861
    %v866 = vmul.f32 %v850, %v857
    %v867 = vmul.f32 %v851, %v861
    %v868 = vadd.f32 %v864, %v865
    %869 = vadd.xlane.f32.xlu0 %v868
    %v870 = vpop.xlane.xlu0 %869
    %v871 = vadd.f32 %v866, %v867
    %872 = vadd.xlane.f32.xlu0 %v871
    %v873 = vpop.xlane.xlu0 %872
    %v874 = vadd.f32 %v870, 0.0
    %v875 = vadd.f32 %v873, 0.0
    %876 = vset.pattern.permute.xlu0 1
    %877 = vperm.xlu0 %876, %v70
    %v878 = vpop.permute.xlu0 %877
    %880 = vset.pattern.permute.xlu0 1
    %881 = vperm.xlu0 %880, %v71
    %v882 = vpop.permute.xlu0 %881
    %v884 = vmul.f32 %v344, %v878
    %v885 = vmul.f32 %v346, %v878
    %v886 = vmul.f32 %v350, %v882
    %v887 = vmul.f32 %v352, %v882
    %v888 = vmul.f32 %v884, 0.5
    %v889 = vmul.f32 %v885, 0.5
    %v890 = vmul.f32 %v886, 0.5
    %v891 = vmul.f32 %v887, 0.5
    %v892 = vtanh.pop %v888
    %v893 = vtanh.pop %v889
    %v894 = vtanh.pop %v890
    %v895 = vtanh.pop %v891
    %v896 = vadd.f32 %v892, 1.0
    %v897 = vadd.f32 %v893, 1.0
    %v898 = vadd.f32 %v894, 1.0
    %v899 = vadd.f32 %v895, 1.0
    %v900 = vmul.f32 %v888, %v896
    %v901 = vmul.f32 %v889, %v897
    %v902 = vmul.f32 %v890, %v898
    %v903 = vmul.f32 %v891, %v899
    %s904 = scalar_lea.vmem [#allocation5], 512
    %v905 = vld [vmem:[%s904] sm:$0xff]
    %v906 = vld [vmem:[%s904 + $0x8] sm:$0xff]
    %v907 = vld [vmem:[%s904 + $0x10] sm:$0xff]
    %v908 = vld [vmem:[%s904 + $0x18] sm:$0xff]
    %v909 = vld [vmem:[%s904 + $0x20] sm:$0xff]
    %v910 = vld [vmem:[%s904 + $0x28] sm:$0xff]
    %v911 = vld [vmem:[%s904 + $0x30] sm:$0xff]
    %v912 = vld [vmem:[%s904 + $0x38] sm:$0xff]
    %v913 = vld [vmem:[%s904 + $0x40] sm:$0xff]
    %v914 = vld [vmem:[%s904 + $0x48] sm:$0xff]
    %v915 = vld [vmem:[%s904 + $0x50] sm:$0xff]
    %v916 = vld [vmem:[%s904 + $0x58] sm:$0xff]
    %v917 = vld [vmem:[%s904 + $0x60] sm:$0xff]
    %v918 = vld [vmem:[%s904 + $0x68] sm:$0xff]
    %v919 = vld [vmem:[%s904 + $0x70] sm:$0xff]
    %v920 = vld [vmem:[%s904 + $0x78] sm:$0xff]
    %v921 = vld [vmem:[%s904 + $0x80] sm:$0xff]
    %v922 = vld [vmem:[%s904 + $0x88] sm:$0xff]
    %v923 = vld [vmem:[%s904 + $0x90] sm:$0xff]
    %v924 = vld [vmem:[%s904 + $0x98] sm:$0xff]
    %v925 = vld [vmem:[%s904 + $0xa0] sm:$0xff]
    %v926 = vld [vmem:[%s904 + $0xa8] sm:$0xff]
    %v927 = vld [vmem:[%s904 + $0xb0] sm:$0xff]
    %v928 = vld [vmem:[%s904 + $0xb8] sm:$0xff]
    %v929 = vld [vmem:[%s904 + $0xc0] sm:$0xff]
    %v930 = vld [vmem:[%s904 + $0xc8] sm:$0xff]
    %v931 = vld [vmem:[%s904 + $0xd0] sm:$0xff]
    %v932 = vld [vmem:[%s904 + $0xd8] sm:$0xff]
    %v933 = vld [vmem:[%s904 + $0xe0] sm:$0xff]
    %v934 = vld [vmem:[%s904 + $0xe8] sm:$0xff]
    %v935 = vld [vmem:[%s904 + $0xf0] sm:$0xff]
    %v936 = vld [vmem:[%s904 + $0xf8] sm:$0xff]
    %v937 = vld [vmem:[%s904 + $0x100] sm:$0xff]
    %v938 = vld [vmem:[%s904 + $0x108] sm:$0xff]
    %v939 = vld [vmem:[%s904 + $0x110] sm:$0xff]
    %v940 = vld [vmem:[%s904 + $0x118] sm:$0xff]
    %v941 = vld [vmem:[%s904 + $0x120] sm:$0xff]
    %v942 = vld [vmem:[%s904 + $0x128] sm:$0xff]
    %v943 = vld [vmem:[%s904 + $0x130] sm:$0xff]
    %v944 = vld [vmem:[%s904 + $0x138] sm:$0xff]
    %v945 = vld [vmem:[%s904 + $0x140] sm:$0xff]
    %v946 = vld [vmem:[%s904 + $0x148] sm:$0xff]
    %v947 = vld [vmem:[%s904 + $0x150] sm:$0xff]
    %v948 = vld [vmem:[%s904 + $0x158] sm:$0xff]
    %v949 = vld [vmem:[%s904 + $0x160] sm:$0xff]
    %v950 = vld [vmem:[%s904 + $0x168] sm:$0xff]
    %v951 = vld [vmem:[%s904 + $0x170] sm:$0xff]
    %v952 = vld [vmem:[%s904 + $0x178] sm:$0xff]
    %v953 = vld [vmem:[%s904 + $0x180] sm:$0xff]
    %v954 = vld [vmem:[%s904 + $0x188] sm:$0xff]
    %v955 = vld [vmem:[%s904 + $0x190] sm:$0xff]
    %v956 = vld [vmem:[%s904 + $0x198] sm:$0xff]
    %v957 = vld [vmem:[%s904 + $0x1a0] sm:$0xff]
    %v958 = vld [vmem:[%s904 + $0x1a8] sm:$0xff]
    %v959 = vld [vmem:[%s904 + $0x1b0] sm:$0xff]
    %v960 = vld [vmem:[%s904 + $0x1b8] sm:$0xff]
    %v961 = vld [vmem:[%s904 + $0x1c0] sm:$0xff]
    %v962 = vld [vmem:[%s904 + $0x1c8] sm:$0xff]
    %v963 = vld [vmem:[%s904 + $0x1d0] sm:$0xff]
    %v964 = vld [vmem:[%s904 + $0x1d8] sm:$0xff]
    %v965 = vld [vmem:[%s904 + $0x1e0] sm:$0xff]
    %v966 = vld [vmem:[%s904 + $0x1e8] sm:$0xff]
    %v967 = vld [vmem:[%s904 + $0x1f0] sm:$0xff]
    %v968 = vld [vmem:[%s904 + $0x1f8] sm:$0xff]
    %969 = vmatprep.subr.mxu0 %v936
    %970 = vmatpush1.msra.mxu0 %v935
    %971 = vmatprep.subr.mxu0 %v934
    %972 = vmatpush1.msra.mxu0 %v933
    %973 = vmatprep.subr.mxu0 %v932
    %974 = vmatpush1.msra.mxu0 %v931
    %975 = vmatprep.subr.mxu0 %v930
    %976 = vmatpush1.msra.mxu0 %v929
    %977 = vmatprep.subr.mxu0 %v928
    %978 = vmatpush1.msra.mxu0 %v927
    %979 = vmatprep.subr.mxu0 %v926
    %980 = vmatpush1.msra.mxu0 %v925
    %981 = vmatprep.subr.mxu0 %v924
    %982 = vmatpush1.msra.mxu0 %v923
    %983 = vmatprep.subr.mxu0 %v922
    %984 = vmatpush1.msra.mxu0 %v921
    %985 = vmatprep.subr.mxu0 %v920
    %986 = vmatpush1.msra.mxu0 %v919
    %987 = vmatprep.subr.mxu0 %v918
    %988 = vmatpush1.msra.mxu0 %v917
    %989 = vmatprep.subr.mxu0 %v916
    %990 = vmatpush1.msra.mxu0 %v915
    %991 = vmatprep.subr.mxu0 %v914
    %992 = vmatpush1.msra.mxu0 %v913
    %993 = vmatprep.subr.mxu0 %v912
    %994 = vmatpush1.msra.mxu0 %v911
    %995 = vmatprep.subr.mxu0 %v910
    %996 = vmatpush1.msra.mxu0 %v909
    %997 = vmatprep.subr.mxu0 %v908
    %998 = vmatpush1.msra.mxu0 %v907
    %999 = vmatprep.subr.mxu0 %v906
    %1000 = vmatpush1.msra.mxu0 %v905
    %1001 = vmatprep.subr.mxu0 %v968
    %1002 = vmatpush2.msra.mxu0 %v967
    %1003 = vmatprep.subr.mxu0 %v966
    %1004 = vmatpush2.msra.mxu0 %v965
    %1005 = vmatprep.subr.mxu0 %v964
    %1006 = vmatpush2.msra.mxu0 %v963
    %1007 = vmatprep.subr.mxu0 %v962
    %1008 = vmatpush2.msra.mxu0 %v961
    %1009 = vmatprep.subr.mxu0 %v960
    %1010 = vmatpush2.msra.mxu0 %v959
    %1011 = vmatprep.subr.mxu0 %v958
    %1012 = vmatpush2.msra.mxu0 %v957
    %1013 = vmatprep.subr.mxu0 %v956
    %1014 = vmatpush2.msra.mxu0 %v955
    %1015 = vmatprep.subr.mxu0 %v954
    %1016 = vmatpush2.msra.mxu0 %v953
    %1017 = vmatprep.subr.mxu0 %v952
    %1018 = vmatpush2.msra.mxu0 %v951
    %1019 = vmatprep.subr.mxu0 %v950
    %1020 = vmatpush2.msra.mxu0 %v949
    %1021 = vmatprep.subr.mxu0 %v948
    %1022 = vmatpush2.msra.mxu0 %v947
    %1023 = vmatprep.subr.mxu0 %v946
    %1024 = vmatpush2.msra.mxu0 %v945
    %1025 = vmatprep.subr.mxu0 %v944
    %1026 = vmatpush2.msra.mxu0 %v943
    %1027 = vmatprep.subr.mxu0 %v942
    %1028 = vmatpush2.msra.mxu0 %v941
    %1029 = vmatprep.subr.mxu0 %v940
    %1030 = vmatpush2.msra.mxu0 %v939
    %1031 = vmatprep.subr.mxu0 %v938
    %1032 = vmatpush2.msra.mxu0 %v937
    %1033 = vmatprep.mubr.f32.mxu0 %v901
    %1034 = vmatmul.mubr.f32.gmra.mxu0 %v900
    %v1035 = vpop.f32.mrf.mxu0
    %v1036 = vadd.f32 0.0, %v1035
    %v1037 = vpop.f32.mrf.mxu0
    %v1038 = vadd.f32 0.0, %v1037
    %1039 = vmatprep.mubr.f32.mxu0 %v903
    %1040 = vmatmul.mubr.f32.gmra.mxu0 %v902
    %v1041 = vpop.f32.mrf.mxu0
    %v1042 = vadd.f32 0.0, %v1041
    %v1043 = vpop.f32.mrf.mxu0
    %v1044 = vadd.f32 0.0, %v1043
    %1045 = vdwg.mxu0
    %v1046 = vmul.f32 %v1036, 0.5
    %v1047 = vmul.f32 %v1038, 0.5
    %v1048 = vmul.f32 %v1042, 0.5
    %v1049 = vmul.f32 %v1044, 0.5
    %v1050 = vtanh.pop %v1046
    %v1051 = vtanh.pop %v1047
    %v1052 = vtanh.pop %v1048
    %v1053 = vtanh.pop %v1049
    %v1054 = vadd.f32 %v1050, 1.0
    %v1055 = vadd.f32 %v1051, 1.0
    %v1056 = vadd.f32 %v1052, 1.0
    %v1057 = vadd.f32 %v1053, 1.0
    %v1058 = vmul.f32 %v1046, %v1054
    %v1059 = vmul.f32 %v1047, %v1055
    %v1060 = vmul.f32 %v1048, %v1056
    %v1061 = vmul.f32 %v1049, %v1057
    %s1062 = scalar_lea.vmem [#allocation7], 512
    %v1063 = vld [vmem:[%s1062] sm:$0xff]
    %v1064 = vld [vmem:[%s1062 + $0x8] sm:$0xff]
    %v1065 = vld [vmem:[%s1062 + $0x10] sm:$0xff]
    %v1066 = vld [vmem:[%s1062 + $0x18] sm:$0xff]
    %v1067 = vld [vmem:[%s1062 + $0x20] sm:$0xff]
    %v1068 = vld [vmem:[%s1062 + $0x28] sm:$0xff]
    %v1069 = vld [vmem:[%s1062 + $0x30] sm:$0xff]
    %v1070 = vld [vmem:[%s1062 + $0x38] sm:$0xff]
    %v1071 = vld [vmem:[%s1062 + $0x40] sm:$0xff]
    %v1072 = vld [vmem:[%s1062 + $0x48] sm:$0xff]
    %v1073 = vld [vmem:[%s1062 + $0x50] sm:$0xff]
    %v1074 = vld [vmem:[%s1062 + $0x58] sm:$0xff]
    %v1075 = vld [vmem:[%s1062 + $0x60] sm:$0xff]
    %v1076 = vld [vmem:[%s1062 + $0x68] sm:$0xff]
    %v1077 = vld [vmem:[%s1062 + $0x70] sm:$0xff]
    %v1078 = vld [vmem:[%s1062 + $0x78] sm:$0xff]
    %v1079 = vld [vmem:[%s1062 + $0x80] sm:$0xff]
    %v1080 = vld [vmem:[%s1062 + $0x88] sm:$0xff]
    %v1081 = vld [vmem:[%s1062 + $0x90] sm:$0xff]
    %v1082 = vld [vmem:[%s1062 + $0x98] sm:$0xff]
    %v1083 = vld [vmem:[%s1062 + $0xa0] sm:$0xff]
    %v1084 = vld [vmem:[%s1062 + $0xa8] sm:$0xff]
    %v1085 = vld [vmem:[%s1062 + $0xb0] sm:$0xff]
    %v1086 = vld [vmem:[%s1062 + $0xb8] sm:$0xff]
    %v1087 = vld [vmem:[%s1062 + $0xc0] sm:$0xff]
    %v1088 = vld [vmem:[%s1062 + $0xc8] sm:$0xff]
    %v1089 = vld [vmem:[%s1062 + $0xd0] sm:$0xff]
    %v1090 = vld [vmem:[%s1062 + $0xd8] sm:$0xff]
    %v1091 = vld [vmem:[%s1062 + $0xe0] sm:$0xff]
    %v1092 = vld [vmem:[%s1062 + $0xe8] sm:$0xff]
    %v1093 = vld [vmem:[%s1062 + $0xf0] sm:$0xff]
    %v1094 = vld [vmem:[%s1062 + $0xf8] sm:$0xff]
    %v1095 = vld [vmem:[%s1062 + $0x100] sm:$0xff]
    %v1096 = vld [vmem:[%s1062 + $0x108] sm:$0xff]
    %v1097 = vld [vmem:[%s1062 + $0x110] sm:$0xff]
    %v1098 = vld [vmem:[%s1062 + $0x118] sm:$0xff]
    %v1099 = vld [vmem:[%s1062 + $0x120] sm:$0xff]
    %v1100 = vld [vmem:[%s1062 + $0x128] sm:$0xff]
    %v1101 = vld [vmem:[%s1062 + $0x130] sm:$0xff]
    %v1102 = vld [vmem:[%s1062 + $0x138] sm:$0xff]
    %v1103 = vld [vmem:[%s1062 + $0x140] sm:$0xff]
    %v1104 = vld [vmem:[%s1062 + $0x148] sm:$0xff]
    %v1105 = vld [vmem:[%s1062 + $0x150] sm:$0xff]
    %v1106 = vld [vmem:[%s1062 + $0x158] sm:$0xff]
    %v1107 = vld [vmem:[%s1062 + $0x160] sm:$0xff]
    %v1108 = vld [vmem:[%s1062 + $0x168] sm:$0xff]
    %v1109 = vld [vmem:[%s1062 + $0x170] sm:$0xff]
    %v1110 = vld [vmem:[%s1062 + $0x178] sm:$0xff]
    %v1111 = vld [vmem:[%s1062 + $0x180] sm:$0xff]
    %v1112 = vld [vmem:[%s1062 + $0x188] sm:$0xff]
    %v1113 = vld [vmem:[%s1062 + $0x190] sm:$0xff]
    %v1114 = vld [vmem:[%s1062 + $0x198] sm:$0xff]
    %v1115 = vld [vmem:[%s1062 + $0x1a0] sm:$0xff]
    %v1116 = vld [vmem:[%s1062 + $0x1a8] sm:$0xff]
    %v1117 = vld [vmem:[%s1062 + $0x1b0] sm:$0xff]
    %v1118 = vld [vmem:[%s1062 + $0x1b8] sm:$0xff]
    %v1119 = vld [vmem:[%s1062 + $0x1c0] sm:$0xff]
    %v1120 = vld [vmem:[%s1062 + $0x1c8] sm:$0xff]
    %v1121 = vld [vmem:[%s1062 + $0x1d0] sm:$0xff]
    %v1122 = vld [vmem:[%s1062 + $0x1d8] sm:$0xff]
    %v1123 = vld [vmem:[%s1062 + $0x1e0] sm:$0xff]
    %v1124 = vld [vmem:[%s1062 + $0x1e8] sm:$0xff]
    %v1125 = vld [vmem:[%s1062 + $0x1f0] sm:$0xff]
    %v1126 = vld [vmem:[%s1062 + $0x1f8] sm:$0xff]
    %1127 = vmatprep.subr.mxu0 %v1094
    %1128 = vmatpush1.msra.mxu0 %v1093
    %1129 = vmatprep.subr.mxu0 %v1092
    %1130 = vmatpush1.msra.mxu0 %v1091
    %1131 = vmatprep.subr.mxu0 %v1090
    %1132 = vmatpush1.msra.mxu0 %v1089
    %1133 = vmatprep.subr.mxu0 %v1088
    %1134 = vmatpush1.msra.mxu0 %v1087
    %1135 = vmatprep.subr.mxu0 %v1086
    %1136 = vmatpush1.msra.mxu0 %v1085
    %1137 = vmatprep.subr.mxu0 %v1084
    %1138 = vmatpush1.msra.mxu0 %v1083
    %1139 = vmatprep.subr.mxu0 %v1082
    %1140 = vmatpush1.msra.mxu0 %v1081
    %1141 = vmatprep.subr.mxu0 %v1080
    %1142 = vmatpush1.msra.mxu0 %v1079
    %1143 = vmatprep.subr.mxu0 %v1078
    %1144 = vmatpush1.msra.mxu0 %v1077
    %1145 = vmatprep.subr.mxu0 %v1076
    %1146 = vmatpush1.msra.mxu0 %v1075
    %1147 = vmatprep.subr.mxu0 %v1074
    %1148 = vmatpush1.msra.mxu0 %v1073
    %1149 = vmatprep.subr.mxu0 %v1072
    %1150 = vmatpush1.msra.mxu0 %v1071
    %1151 = vmatprep.subr.mxu0 %v1070
    %1152 = vmatpush1.msra.mxu0 %v1069
    %1153 = vmatprep.subr.mxu0 %v1068
    %1154 = vmatpush1.msra.mxu0 %v1067
    %1155 = vmatprep.subr.mxu0 %v1066
    %1156 = vmatpush1.msra.mxu0 %v1065
    %1157 = vmatprep.subr.mxu0 %v1064
    %1158 = vmatpush1.msra.mxu0 %v1063
    %1159 = vmatprep.subr.mxu0 %v1126
    %1160 = vmatpush2.msra.mxu0 %v1125
    %1161 = vmatprep.subr.mxu0 %v1124
    %1162 = vmatpush2.msra.mxu0 %v1123
    %1163 = vmatprep.subr.mxu0 %v1122
    %1164 = vmatpush2.msra.mxu0 %v1121
    %1165 = vmatprep.subr.mxu0 %v1120
    %1166 = vmatpush2.msra.mxu0 %v1119
    %1167 = vmatprep.subr.mxu0 %v1118
    %1168 = vmatpush2.msra.mxu0 %v1117
    %1169 = vmatprep.subr.mxu0 %v1116
    %1170 = vmatpush2.msra.mxu0 %v1115
    %1171 = vmatprep.subr.mxu0 %v1114
    %1172 = vmatpush2.msra.mxu0 %v1113
    %1173 = vmatprep.subr.mxu0 %v1112
    %1174 = vmatpush2.msra.mxu0 %v1111
    %1175 = vmatprep.subr.mxu0 %v1110
    %1176 = vmatpush2.msra.mxu0 %v1109
    %1177 = vmatprep.subr.mxu0 %v1108
    %1178 = vmatpush2.msra.mxu0 %v1107
    %1179 = vmatprep.subr.mxu0 %v1106
    %1180 = vmatpush2.msra.mxu0 %v1105
    %1181 = vmatprep.subr.mxu0 %v1104
    %1182 = vmatpush2.msra.mxu0 %v1103
    %1183 = vmatprep.subr.mxu0 %v1102
    %1184 = vmatpush2.msra.mxu0 %v1101
    %1185 = vmatprep.subr.mxu0 %v1100
    %1186 = vmatpush2.msra.mxu0 %v1099
    %1187 = vmatprep.subr.mxu0 %v1098
    %1188 = vmatpush2.msra.mxu0 %v1097
    %1189 = vmatprep.subr.mxu0 %v1096
    %1190 = vmatpush2.msra.mxu0 %v1095
    %1191 = vmatprep.mubr.f32.mxu0 %v1059
    %1192 = vmatmul.mubr.f32.gmra.mxu0 %v1058
    %v1193 = vpop.f32.mrf.mxu0
    %v1194 = vadd.f32 0.0, %v1193
    %v1195 = vpop.f32.mrf.mxu0
    %v1196 = vadd.f32 0.0, %v1195
    %1197 = vmatprep.mubr.f32.mxu0 %v1061
    %1198 = vmatmul.mubr.f32.gmra.mxu0 %v1060
    %v1199 = vpop.f32.mrf.mxu0
    %v1200 = vadd.f32 0.0, %v1199
    %v1201 = vpop.f32.mrf.mxu0
    %v1202 = vadd.f32 0.0, %v1201
    %1203 = vdwg.mxu0
    %v1204 = vmul.f32 %v1194, 0.5
    %v1205 = vmul.f32 %v1196, 0.5
    %v1206 = vmul.f32 %v1200, 0.5
    %v1207 = vmul.f32 %v1202, 0.5
    %v1208 = vtanh.pop %v1204
    %v1209 = vtanh.pop %v1205
    %v1210 = vtanh.pop %v1206
    %v1211 = vtanh.pop %v1207
    %v1212 = vadd.f32 %v1208, 1.0
    %v1213 = vadd.f32 %v1209, 1.0
    %v1214 = vadd.f32 %v1210, 1.0
    %v1215 = vadd.f32 %v1211, 1.0
    %v1216 = vmul.f32 %v1204, %v1212
    %v1217 = vmul.f32 %v1205, %v1213
    %v1218 = vmul.f32 %v1206, %v1214
    %v1219 = vmul.f32 %v1207, %v1215
    %s1220 = scalar_lea.vmem %s6, 1
    %v1221 = vld [vmem:[%s1220] ss:$4 sm:$0x3]
    %v1223 = vlaneseq
    %v1224 = vshrl.u32 %v1223, 7
    %v1225 = vsub.s32 0, %v1224
    %v1226 = vrot.slane %v1221, %v1225
    %v1227 = vlaneseq
    %v1228 = vshrl.u32 %v1227, 7
    %v1229 = vsub.s32 1, %v1228
    %v1230 = vrot.slane %v1221, %v1229
    %v1233 = vmul.f32 %v1216, %v1226
    %v1234 = vmul.f32 %v1217, %v1230
    %v1235 = vmul.f32 %v1218, %v1226
    %v1236 = vmul.f32 %v1219, %v1230
    %v1237 = vadd.f32 %v1233, %v1234
    %1238 = vadd.xlane.f32.xlu0 %v1237
    %v1239 = vpop.xlane.xlu0 %1238
    %v1240 = vadd.f32 %v1235, %v1236
    %1241 = vadd.xlane.f32.xlu0 %v1240
    %v1242 = vpop.xlane.xlu0 %1241
    %v1243 = vadd.f32 %v874, %v1239
    %v1244 = vadd.f32 %v875, %v1242
    %1245 = vset.pattern.permute.xlu0 2
    %1246 = vperm.xlu0 %1245, %v70
    %v1247 = vpop.permute.xlu0 %1246
    %1249 = vset.pattern.permute.xlu0 2
    %1250 = vperm.xlu0 %1249, %v71
    %v1251 = vpop.permute.xlu0 %1250
    %v1253 = vmul.f32 %v421, %v1247
    %v1254 = vmul.f32 %v423, %v1247
    %v1255 = vmul.f32 %v427, %v1251
    %v1256 = vmul.f32 %v429, %v1251
    %v1257 = vmul.f32 %v1253, 0.5
    %v1258 = vmul.f32 %v1254, 0.5
    %v1259 = vmul.f32 %v1255, 0.5
    %v1260 = vmul.f32 %v1256, 0.5
    %v1261 = vtanh.pop %v1257
    %v1262 = vtanh.pop %v1258
    %v1263 = vtanh.pop %v1259
    %v1264 = vtanh.pop %v1260
    %v1265 = vadd.f32 %v1261, 1.0
    %v1266 = vadd.f32 %v1262, 1.0
    %v1267 = vadd.f32 %v1263, 1.0
    %v1268 = vadd.f32 %v1264, 1.0
    %v1269 = vmul.f32 %v1257, %v1265
    %v1270 = vmul.f32 %v1258, %v1266
    %v1271 = vmul.f32 %v1259, %v1267
    %v1272 = vmul.f32 %v1260, %v1268
    %s1273 = scalar_lea.vmem [#allocation5], 1024
    %v1274 = vld [vmem:[%s1273] sm:$0xff]
    %v1275 = vld [vmem:[%s1273 + $0x8] sm:$0xff]
    %v1276 = vld [vmem:[%s1273 + $0x10] sm:$0xff]
    %v1277 = vld [vmem:[%s1273 + $0x18] sm:$0xff]
    %v1278 = vld [vmem:[%s1273 + $0x20] sm:$0xff]
    %v1279 = vld [vmem:[%s1273 + $0x28] sm:$0xff]
    %v1280 = vld [vmem:[%s1273 + $0x30] sm:$0xff]
    %v1281 = vld [vmem:[%s1273 + $0x38] sm:$0xff]
    %v1282 = vld [vmem:[%s1273 + $0x40] sm:$0xff]
    %v1283 = vld [vmem:[%s1273 + $0x48] sm:$0xff]
    %v1284 = vld [vmem:[%s1273 + $0x50] sm:$0xff]
    %v1285 = vld [vmem:[%s1273 + $0x58] sm:$0xff]
    %v1286 = vld [vmem:[%s1273 + $0x60] sm:$0xff]
    %v1287 = vld [vmem:[%s1273 + $0x68] sm:$0xff]
    %v1288 = vld [vmem:[%s1273 + $0x70] sm:$0xff]
    %v1289 = vld [vmem:[%s1273 + $0x78] sm:$0xff]
    %v1290 = vld [vmem:[%s1273 + $0x80] sm:$0xff]
    %v1291 = vld [vmem:[%s1273 + $0x88] sm:$0xff]
    %v1292 = vld [vmem:[%s1273 + $0x90] sm:$0xff]
    %v1293 = vld [vmem:[%s1273 + $0x98] sm:$0xff]
    %v1294 = vld [vmem:[%s1273 + $0xa0] sm:$0xff]
    %v1295 = vld [vmem:[%s1273 + $0xa8] sm:$0xff]
    %v1296 = vld [vmem:[%s1273 + $0xb0] sm:$0xff]
    %v1297 = vld [vmem:[%s1273 + $0xb8] sm:$0xff]
    %v1298 = vld [vmem:[%s1273 + $0xc0] sm:$0xff]
    %v1299 = vld [vmem:[%s1273 + $0xc8] sm:$0xff]
    %v1300 = vld [vmem:[%s1273 + $0xd0] sm:$0xff]
    %v1301 = vld [vmem:[%s1273 + $0xd8] sm:$0xff]
    %v1302 = vld [vmem:[%s1273 + $0xe0] sm:$0xff]
    %v1303 = vld [vmem:[%s1273 + $0xe8] sm:$0xff]
    %v1304 = vld [vmem:[%s1273 + $0xf0] sm:$0xff]
    %v1305 = vld [vmem:[%s1273 + $0xf8] sm:$0xff]
    %v1306 = vld [vmem:[%s1273 + $0x100] sm:$0xff]
    %v1307 = vld [vmem:[%s1273 + $0x108] sm:$0xff]
    %v1308 = vld [vmem:[%s1273 + $0x110] sm:$0xff]
    %v1309 = vld [vmem:[%s1273 + $0x118] sm:$0xff]
    %v1310 = vld [vmem:[%s1273 + $0x120] sm:$0xff]
    %v1311 = vld [vmem:[%s1273 + $0x128] sm:$0xff]
    %v1312 = vld [vmem:[%s1273 + $0x130] sm:$0xff]
    %v1313 = vld [vmem:[%s1273 + $0x138] sm:$0xff]
    %v1314 = vld [vmem:[%s1273 + $0x140] sm:$0xff]
    %v1315 = vld [vmem:[%s1273 + $0x148] sm:$0xff]
    %v1316 = vld [vmem:[%s1273 + $0x150] sm:$0xff]
    %v1317 = vld [vmem:[%s1273 + $0x158] sm:$0xff]
    %v1318 = vld [vmem:[%s1273 + $0x160] sm:$0xff]
    %v1319 = vld [vmem:[%s1273 + $0x168] sm:$0xff]
    %v1320 = vld [vmem:[%s1273 + $0x170] sm:$0xff]
    %v1321 = vld [vmem:[%s1273 + $0x178] sm:$0xff]
    %v1322 = vld [vmem:[%s1273 + $0x180] sm:$0xff]
    %v1323 = vld [vmem:[%s1273 + $0x188] sm:$0xff]
    %v1324 = vld [vmem:[%s1273 + $0x190] sm:$0xff]
    %v1325 = vld [vmem:[%s1273 + $0x198] sm:$0xff]
    %v1326 = vld [vmem:[%s1273 + $0x1a0] sm:$0xff]
    %v1327 = vld [vmem:[%s1273 + $0x1a8] sm:$0xff]
    %v1328 = vld [vmem:[%s1273 + $0x1b0] sm:$0xff]
    %v1329 = vld [vmem:[%s1273 + $0x1b8] sm:$0xff]
    %v1330 = vld [vmem:[%s1273 + $0x1c0] sm:$0xff]
    %v1331 = vld [vmem:[%s1273 + $0x1c8] sm:$0xff]
    %v1332 = vld [vmem:[%s1273 + $0x1d0] sm:$0xff]
    %v1333 = vld [vmem:[%s1273 + $0x1d8] sm:$0xff]
    %v1334 = vld [vmem:[%s1273 + $0x1e0] sm:$0xff]
    %v1335 = vld [vmem:[%s1273 + $0x1e8] sm:$0xff]
    %v1336 = vld [vmem:[%s1273 + $0x1f0] sm:$0xff]
    %v1337 = vld [vmem:[%s1273 + $0x1f8] sm:$0xff]
    %1338 = vmatprep.subr.mxu0 %v1305
    %1339 = vmatpush1.msra.mxu0 %v1304
    %1340 = vmatprep.subr.mxu0 %v1303
    %1341 = vmatpush1.msra.mxu0 %v1302
    %1342 = vmatprep.subr.mxu0 %v1301
    %1343 = vmatpush1.msra.mxu0 %v1300
    %1344 = vmatprep.subr.mxu0 %v1299
    %1345 = vmatpush1.msra.mxu0 %v1298
    %1346 = vmatprep.subr.mxu0 %v1297
    %1347 = vmatpush1.msra.mxu0 %v1296
    %1348 = vmatprep.subr.mxu0 %v1295
    %1349 = vmatpush1.msra.mxu0 %v1294
    %1350 = vmatprep.subr.mxu0 %v1293
    %1351 = vmatpush1.msra.mxu0 %v1292
    %1352 = vmatprep.subr.mxu0 %v1291
    %1353 = vmatpush1.msra.mxu0 %v1290
    %1354 = vmatprep.subr.mxu0 %v1289
    %1355 = vmatpush1.msra.mxu0 %v1288
    %1356 = vmatprep.subr.mxu0 %v1287
    %1357 = vmatpush1.msra.mxu0 %v1286
    %1358 = vmatprep.subr.mxu0 %v1285
    %1359 = vmatpush1.msra.mxu0 %v1284
    %1360 = vmatprep.subr.mxu0 %v1283
    %1361 = vmatpush1.msra.mxu0 %v1282
    %1362 = vmatprep.subr.mxu0 %v1281
    %1363 = vmatpush1.msra.mxu0 %v1280
    %1364 = vmatprep.subr.mxu0 %v1279
    %1365 = vmatpush1.msra.mxu0 %v1278
    %1366 = vmatprep.subr.mxu0 %v1277
    %1367 = vmatpush1.msra.mxu0 %v1276
    %1368 = vmatprep.subr.mxu0 %v1275
    %1369 = vmatpush1.msra.mxu0 %v1274
    %1370 = vmatprep.subr.mxu0 %v1337
    %1371 = vmatpush2.msra.mxu0 %v1336
    %1372 = vmatprep.subr.mxu0 %v1335
    %1373 = vmatpush2.msra.mxu0 %v1334
    %1374 = vmatprep.subr.mxu0 %v1333
    %1375 = vmatpush2.msra.mxu0 %v1332
    %1376 = vmatprep.subr.mxu0 %v1331
    %1377 = vmatpush2.msra.mxu0 %v1330
    %1378 = vmatprep.subr.mxu0 %v1329
    %1379 = vmatpush2.msra.mxu0 %v1328
    %1380 = vmatprep.subr.mxu0 %v1327
    %1381 = vmatpush2.msra.mxu0 %v1326
    %1382 = vmatprep.subr.mxu0 %v1325
    %1383 = vmatpush2.msra.mxu0 %v1324
    %1384 = vmatprep.subr.mxu0 %v1323
    %1385 = vmatpush2.msra.mxu0 %v1322
    %1386 = vmatprep.subr.mxu0 %v1321
    %1387 = vmatpush2.msra.mxu0 %v1320
    %1388 = vmatprep.subr.mxu0 %v1319
    %1389 = vmatpush2.msra.mxu0 %v1318
    %1390 = vmatprep.subr.mxu0 %v1317
    %1391 = vmatpush2.msra.mxu0 %v1316
    %1392 = vmatprep.subr.mxu0 %v1315
    %1393 = vmatpush2.msra.mxu0 %v1314
    %1394 = vmatprep.subr.mxu0 %v1313
    %1395 = vmatpush2.msra.mxu0 %v1312
    %1396 = vmatprep.subr.mxu0 %v1311
    %1397 = vmatpush2.msra.mxu0 %v1310
    %1398 = vmatprep.subr.mxu0 %v1309
    %1399 = vmatpush2.msra.mxu0 %v1308
    %1400 = vmatprep.subr.mxu0 %v1307
    %1401 = vmatpush2.msra.mxu0 %v1306
    %1402 = vmatprep.mubr.f32.mxu0 %v1270
    %1403 = vmatmul.mubr.f32.gmra.mxu0 %v1269
    %v1404 = vpop.f32.mrf.mxu0
    %v1405 = vadd.f32 0.0, %v1404
    %v1406 = vpop.f32.mrf.mxu0
    %v1407 = vadd.f32 0.0, %v1406
    %1408 = vmatprep.mubr.f32.mxu0 %v1272
    %1409 = vmatmul.mubr.f32.gmra.mxu0 %v1271
    %v1410 = vpop.f32.mrf.mxu0
    %v1411 = vadd.f32 0.0, %v1410
    %v1412 = vpop.f32.mrf.mxu0
    %v1413 = vadd.f32 0.0, %v1412
    %1414 = vdwg.mxu0
    %v1415 = vmul.f32 %v1405, 0.5
    %v1416 = vmul.f32 %v1407, 0.5
    %v1417 = vmul.f32 %v1411, 0.5
    %v1418 = vmul.f32 %v1413, 0.5
    %v1419 = vtanh.pop %v1415
    %v1420 = vtanh.pop %v1416
    %v1421 = vtanh.pop %v1417
    %v1422 = vtanh.pop %v1418
    %v1423 = vadd.f32 %v1419, 1.0
    %v1424 = vadd.f32 %v1420, 1.0
    %v1425 = vadd.f32 %v1421, 1.0
    %v1426 = vadd.f32 %v1422, 1.0
    %v1427 = vmul.f32 %v1415, %v1423
    %v1428 = vmul.f32 %v1416, %v1424
    %v1429 = vmul.f32 %v1417, %v1425
    %v1430 = vmul.f32 %v1418, %v1426
    %s1431 = scalar_lea.vmem [#allocation7], 1024
    %v1432 = vld [vmem:[%s1431] sm:$0xff]
    %v1433 = vld [vmem:[%s1431 + $0x8] sm:$0xff]
    %v1434 = vld [vmem:[%s1431 + $0x10] sm:$0xff]
    %v1435 = vld [vmem:[%s1431 + $0x18] sm:$0xff]
    %v1436 = vld [vmem:[%s1431 + $0x20] sm:$0xff]
    %v1437 = vld [vmem:[%s1431 + $0x28] sm:$0xff]
    %v1438 = vld [vmem:[%s1431 + $0x30] sm:$0xff]
    %v1439 = vld [vmem:[%s1431 + $0x38] sm:$0xff]
    %v1440 = vld [vmem:[%s1431 + $0x40] sm:$0xff]
    %v1441 = vld [vmem:[%s1431 + $0x48] sm:$0xff]
    %v1442 = vld [vmem:[%s1431 + $0x50] sm:$0xff]
    %v1443 = vld [vmem:[%s1431 + $0x58] sm:$0xff]
    %v1444 = vld [vmem:[%s1431 + $0x60] sm:$0xff]
    %v1445 = vld [vmem:[%s1431 + $0x68] sm:$0xff]
    %v1446 = vld [vmem:[%s1431 + $0x70] sm:$0xff]
    %v1447 = vld [vmem:[%s1431 + $0x78] sm:$0xff]
    %v1448 = vld [vmem:[%s1431 + $0x80] sm:$0xff]
    %v1449 = vld [vmem:[%s1431 + $0x88] sm:$0xff]
    %v1450 = vld [vmem:[%s1431 + $0x90] sm:$0xff]
    %v1451 = vld [vmem:[%s1431 + $0x98] sm:$0xff]
    %v1452 = vld [vmem:[%s1431 + $0xa0] sm:$0xff]
    %v1453 = vld [vmem:[%s1431 + $0xa8] sm:$0xff]
    %v1454 = vld [vmem:[%s1431 + $0xb0] sm:$0xff]
    %v1455 = vld [vmem:[%s1431 + $0xb8] sm:$0xff]
    %v1456 = vld [vmem:[%s1431 + $0xc0] sm:$0xff]
    %v1457 = vld [vmem:[%s1431 + $0xc8] sm:$0xff]
    %v1458 = vld [vmem:[%s1431 + $0xd0] sm:$0xff]
    %v1459 = vld [vmem:[%s1431 + $0xd8] sm:$0xff]
    %v1460 = vld [vmem:[%s1431 + $0xe0] sm:$0xff]
    %v1461 = vld [vmem:[%s1431 + $0xe8] sm:$0xff]
    %v1462 = vld [vmem:[%s1431 + $0xf0] sm:$0xff]
    %v1463 = vld [vmem:[%s1431 + $0xf8] sm:$0xff]
    %v1464 = vld [vmem:[%s1431 + $0x100] sm:$0xff]
    %v1465 = vld [vmem:[%s1431 + $0x108] sm:$0xff]
    %v1466 = vld [vmem:[%s1431 + $0x110] sm:$0xff]
    %v1467 = vld [vmem:[%s1431 + $0x118] sm:$0xff]
    %v1468 = vld [vmem:[%s1431 + $0x120] sm:$0xff]
    %v1469 = vld [vmem:[%s1431 + $0x128] sm:$0xff]
    %v1470 = vld [vmem:[%s1431 + $0x130] sm:$0xff]
    %v1471 = vld [vmem:[%s1431 + $0x138] sm:$0xff]
    %v1472 = vld [vmem:[%s1431 + $0x140] sm:$0xff]
    %v1473 = vld [vmem:[%s1431 + $0x148] sm:$0xff]
    %v1474 = vld [vmem:[%s1431 + $0x150] sm:$0xff]
    %v1475 = vld [vmem:[%s1431 + $0x158] sm:$0xff]
    %v1476 = vld [vmem:[%s1431 + $0x160] sm:$0xff]
    %v1477 = vld [vmem:[%s1431 + $0x168] sm:$0xff]
    %v1478 = vld [vmem:[%s1431 + $0x170] sm:$0xff]
    %v1479 = vld [vmem:[%s1431 + $0x178] sm:$0xff]
    %v1480 = vld [vmem:[%s1431 + $0x180] sm:$0xff]
    %v1481 = vld [vmem:[%s1431 + $0x188] sm:$0xff]
    %v1482 = vld [vmem:[%s1431 + $0x190] sm:$0xff]
    %v1483 = vld [vmem:[%s1431 + $0x198] sm:$0xff]
    %v1484 = vld [vmem:[%s1431 + $0x1a0] sm:$0xff]
    %v1485 = vld [vmem:[%s1431 + $0x1a8] sm:$0xff]
    %v1486 = vld [vmem:[%s1431 + $0x1b0] sm:$0xff]
    %v1487 = vld [vmem:[%s1431 + $0x1b8] sm:$0xff]
    %v1488 = vld [vmem:[%s1431 + $0x1c0] sm:$0xff]
    %v1489 = vld [vmem:[%s1431 + $0x1c8] sm:$0xff]
    %v1490 = vld [vmem:[%s1431 + $0x1d0] sm:$0xff]
    %v1491 = vld [vmem:[%s1431 + $0x1d8] sm:$0xff]
    %v1492 = vld [vmem:[%s1431 + $0x1e0] sm:$0xff]
    %v1493 = vld [vmem:[%s1431 + $0x1e8] sm:$0xff]
    %v1494 = vld [vmem:[%s1431 + $0x1f0] sm:$0xff]
    %v1495 = vld [vmem:[%s1431 + $0x1f8] sm:$0xff]
    %1496 = vmatprep.subr.mxu0 %v1463
    %1497 = vmatpush1.msra.mxu0 %v1462
    %1498 = vmatprep.subr.mxu0 %v1461
    %1499 = vmatpush1.msra.mxu0 %v1460
    %1500 = vmatprep.subr.mxu0 %v1459
    %1501 = vmatpush1.msra.mxu0 %v1458
    %1502 = vmatprep.subr.mxu0 %v1457
    %1503 = vmatpush1.msra.mxu0 %v1456
    %1504 = vmatprep.subr.mxu0 %v1455
    %1505 = vmatpush1.msra.mxu0 %v1454
    %1506 = vmatprep.subr.mxu0 %v1453
    %1507 = vmatpush1.msra.mxu0 %v1452
    %1508 = vmatprep.subr.mxu0 %v1451
    %1509 = vmatpush1.msra.mxu0 %v1450
    %1510 = vmatprep.subr.mxu0 %v1449
    %1511 = vmatpush1.msra.mxu0 %v1448
    %1512 = vmatprep.subr.mxu0 %v1447
    %1513 = vmatpush1.msra.mxu0 %v1446
    %1514 = vmatprep.subr.mxu0 %v1445
    %1515 = vmatpush1.msra.mxu0 %v1444
    %1516 = vmatprep.subr.mxu0 %v1443
    %1517 = vmatpush1.msra.mxu0 %v1442
    %1518 = vmatprep.subr.mxu0 %v1441
    %1519 = vmatpush1.msra.mxu0 %v1440
    %1520 = vmatprep.subr.mxu0 %v1439
    %1521 = vmatpush1.msra.mxu0 %v1438
    %1522 = vmatprep.subr.mxu0 %v1437
    %1523 = vmatpush1.msra.mxu0 %v1436
    %1524 = vmatprep.subr.mxu0 %v1435
    %1525 = vmatpush1.msra.mxu0 %v1434
    %1526 = vmatprep.subr.mxu0 %v1433
    %1527 = vmatpush1.msra.mxu0 %v1432
    %1528 = vmatprep.subr.mxu0 %v1495
    %1529 = vmatpush2.msra.mxu0 %v1494
    %1530 = vmatprep.subr.mxu0 %v1493
    %1531 = vmatpush2.msra.mxu0 %v1492
    %1532 = vmatprep.subr.mxu0 %v1491
    %1533 = vmatpush2.msra.mxu0 %v1490
    %1534 = vmatprep.subr.mxu0 %v1489
    %1535 = vmatpush2.msra.mxu0 %v1488
    %1536 = vmatprep.subr.mxu0 %v1487
    %1537 = vmatpush2.msra.mxu0 %v1486
    %1538 = vmatprep.subr.mxu0 %v1485
    %1539 = vmatpush2.msra.mxu0 %v1484
    %1540 = vmatprep.subr.mxu0 %v1483
    %1541 = vmatpush2.msra.mxu0 %v1482
    %1542 = vmatprep.subr.mxu0 %v1481
    %1543 = vmatpush2.msra.mxu0 %v1480
    %1544 = vmatprep.subr.mxu0 %v1479
    %1545 = vmatpush2.msra.mxu0 %v1478
    %1546 = vmatprep.subr.mxu0 %v1477
    %1547 = vmatpush2.msra.mxu0 %v1476
    %1548 = vmatprep.subr.mxu0 %v1475
    %1549 = vmatpush2.msra.mxu0 %v1474
    %1550 = vmatprep.subr.mxu0 %v1473
    %1551 = vmatpush2.msra.mxu0 %v1472
    %1552 = vmatprep.subr.mxu0 %v1471
    %1553 = vmatpush2.msra.mxu0 %v1470
    %1554 = vmatprep.subr.mxu0 %v1469
    %1555 = vmatpush2.msra.mxu0 %v1468
    %1556 = vmatprep.subr.mxu0 %v1467
    %1557 = vmatpush2.msra.mxu0 %v1466
    %1558 = vmatprep.subr.mxu0 %v1465
    %1559 = vmatpush2.msra.mxu0 %v1464
    %1560 = vmatprep.mubr.f32.mxu0 %v1428
    %1561 = vmatmul.mubr.f32.gmra.mxu0 %v1427
    %v1562 = vpop.f32.mrf.mxu0
    %v1563 = vadd.f32 0.0, %v1562
    %v1564 = vpop.f32.mrf.mxu0
    %v1565 = vadd.f32 0.0, %v1564
    %1566 = vmatprep.mubr.f32.mxu0 %v1430
    %1567 = vmatmul.mubr.f32.gmra.mxu0 %v1429
    %v1568 = vpop.f32.mrf.mxu0
    %v1569 = vadd.f32 0.0, %v1568
    %v1570 = vpop.f32.mrf.mxu0
    %v1571 = vadd.f32 0.0, %v1570
    %1572 = vdwg.mxu0
    %v1573 = vmul.f32 %v1563, 0.5
    %v1574 = vmul.f32 %v1565, 0.5
    %v1575 = vmul.f32 %v1569, 0.5
    %v1576 = vmul.f32 %v1571, 0.5
    %v1577 = vtanh.pop %v1573
    %v1578 = vtanh.pop %v1574
    %v1579 = vtanh.pop %v1575
    %v1580 = vtanh.pop %v1576
    %v1581 = vadd.f32 %v1577, 1.0
    %v1582 = vadd.f32 %v1578, 1.0
    %v1583 = vadd.f32 %v1579, 1.0
    %v1584 = vadd.f32 %v1580, 1.0
    %v1585 = vmul.f32 %v1573, %v1581
    %v1586 = vmul.f32 %v1574, %v1582
    %v1587 = vmul.f32 %v1575, %v1583
    %v1588 = vmul.f32 %v1576, %v1584
    %s1589 = scalar_lea.vmem %s6, 2
    %v1590 = vld [vmem:[%s1589] ss:$4 sm:$0x3]
    %v1592 = vlaneseq
    %v1593 = vshrl.u32 %v1592, 7
    %v1594 = vsub.s32 0, %v1593
    %v1595 = vrot.slane %v1590, %v1594
    %v1596 = vlaneseq
    %v1597 = vshrl.u32 %v1596, 7
    %v1598 = vsub.s32 1, %v1597
    %v1599 = vrot.slane %v1590, %v1598
    %v1602 = vmul.f32 %v1585, %v1595
    %v1603 = vmul.f32 %v1586, %v1599
    %v1604 = vmul.f32 %v1587, %v1595
    %v1605 = vmul.f32 %v1588, %v1599
    %v1606 = vadd.f32 %v1602, %v1603
    %1607 = vadd.xlane.f32.xlu0 %v1606
    %v1608 = vpop.xlane.xlu0 %1607
    %v1609 = vadd.f32 %v1604, %v1605
    %1610 = vadd.xlane.f32.xlu0 %v1609
    %v1611 = vpop.xlane.xlu0 %1610
    %v1612 = vadd.f32 %v1243, %v1608
    %v1613 = vadd.f32 %v1244, %v1611
    %1614 = vset.pattern.permute.xlu0 3
    %1615 = vperm.xlu0 %1614, %v70
    %v1616 = vpop.permute.xlu0 %1615
    %1618 = vset.pattern.permute.xlu0 3
    %1619 = vperm.xlu0 %1618, %v71
    %v1620 = vpop.permute.xlu0 %1619
    %v1622 = vmul.f32 %v498, %v1616
    %v1623 = vmul.f32 %v500, %v1616
    %v1624 = vmul.f32 %v504, %v1620
    %v1625 = vmul.f32 %v506, %v1620
    %v1626 = vmul.f32 %v1622, 0.5
    %v1627 = vmul.f32 %v1623, 0.5
    %v1628 = vmul.f32 %v1624, 0.5
    %v1629 = vmul.f32 %v1625, 0.5
    %v1630 = vtanh.pop %v1626
    %v1631 = vtanh.pop %v1627
    %v1632 = vtanh.pop %v1628
    %v1633 = vtanh.pop %v1629
    %v1634 = vadd.f32 %v1630, 1.0
    %v1635 = vadd.f32 %v1631, 1.0
    %v1636 = vadd.f32 %v1632, 1.0
    %v1637 = vadd.f32 %v1633, 1.0
    %v1638 = vmul.f32 %v1626, %v1634
    %v1639 = vmul.f32 %v1627, %v1635
    %v1640 = vmul.f32 %v1628, %v1636
    %v1641 = vmul.f32 %v1629, %v1637
    %s1642 = scalar_lea.vmem [#allocation5], 1536
    %v1643 = vld [vmem:[%s1642] sm:$0xff]
    %v1644 = vld [vmem:[%s1642 + $0x8] sm:$0xff]
    %v1645 = vld [vmem:[%s1642 + $0x10] sm:$0xff]
    %v1646 = vld [vmem:[%s1642 + $0x18] sm:$0xff]
    %v1647 = vld [vmem:[%s1642 + $0x20] sm:$0xff]
    %v1648 = vld [vmem:[%s1642 + $0x28] sm:$0xff]
    %v1649 = vld [vmem:[%s1642 + $0x30] sm:$0xff]
    %v1650 = vld [vmem:[%s1642 + $0x38] sm:$0xff]
    %v1651 = vld [vmem:[%s1642 + $0x40] sm:$0xff]
    %v1652 = vld [vmem:[%s1642 + $0x48] sm:$0xff]
    %v1653 = vld [vmem:[%s1642 + $0x50] sm:$0xff]
    %v1654 = vld [vmem:[%s1642 + $0x58] sm:$0xff]
    %v1655 = vld [vmem:[%s1642 + $0x60] sm:$0xff]
    %v1656 = vld [vmem:[%s1642 + $0x68] sm:$0xff]
    %v1657 = vld [vmem:[%s1642 + $0x70] sm:$0xff]
    %v1658 = vld [vmem:[%s1642 + $0x78] sm:$0xff]
    %v1659 = vld [vmem:[%s1642 + $0x80] sm:$0xff]
    %v1660 = vld [vmem:[%s1642 + $0x88] sm:$0xff]
    %v1661 = vld [vmem:[%s1642 + $0x90] sm:$0xff]
    %v1662 = vld [vmem:[%s1642 + $0x98] sm:$0xff]
    %v1663 = vld [vmem:[%s1642 + $0xa0] sm:$0xff]
    %v1664 = vld [vmem:[%s1642 + $0xa8] sm:$0xff]
    %v1665 = vld [vmem:[%s1642 + $0xb0] sm:$0xff]
    %v1666 = vld [vmem:[%s1642 + $0xb8] sm:$0xff]
    %v1667 = vld [vmem:[%s1642 + $0xc0] sm:$0xff]
    %v1668 = vld [vmem:[%s1642 + $0xc8] sm:$0xff]
    %v1669 = vld [vmem:[%s1642 + $0xd0] sm:$0xff]
    %v1670 = vld [vmem:[%s1642 + $0xd8] sm:$0xff]
    %v1671 = vld [vmem:[%s1642 + $0xe0] sm:$0xff]
    %v1672 = vld [vmem:[%s1642 + $0xe8] sm:$0xff]
    %v1673 = vld [vmem:[%s1642 + $0xf0] sm:$0xff]
    %v1674 = vld [vmem:[%s1642 + $0xf8] sm:$0xff]
    %v1675 = vld [vmem:[%s1642 + $0x100] sm:$0xff]
    %v1676 = vld [vmem:[%s1642 + $0x108] sm:$0xff]
    %v1677 = vld [vmem:[%s1642 + $0x110] sm:$0xff]
    %v1678 = vld [vmem:[%s1642 + $0x118] sm:$0xff]
    %v1679 = vld [vmem:[%s1642 + $0x120] sm:$0xff]
    %v1680 = vld [vmem:[%s1642 + $0x128] sm:$0xff]
    %v1681 = vld [vmem:[%s1642 + $0x130] sm:$0xff]
    %v1682 = vld [vmem:[%s1642 + $0x138] sm:$0xff]
    %v1683 = vld [vmem:[%s1642 + $0x140] sm:$0xff]
    %v1684 = vld [vmem:[%s1642 + $0x148] sm:$0xff]
    %v1685 = vld [vmem:[%s1642 + $0x150] sm:$0xff]
    %v1686 = vld [vmem:[%s1642 + $0x158] sm:$0xff]
    %v1687 = vld [vmem:[%s1642 + $0x160] sm:$0xff]
    %v1688 = vld [vmem:[%s1642 + $0x168] sm:$0xff]
    %v1689 = vld [vmem:[%s1642 + $0x170] sm:$0xff]
    %v1690 = vld [vmem:[%s1642 + $0x178] sm:$0xff]
    %v1691 = vld [vmem:[%s1642 + $0x180] sm:$0xff]
    %v1692 = vld [vmem:[%s1642 + $0x188] sm:$0xff]
    %v1693 = vld [vmem:[%s1642 + $0x190] sm:$0xff]
    %v1694 = vld [vmem:[%s1642 + $0x198] sm:$0xff]
    %v1695 = vld [vmem:[%s1642 + $0x1a0] sm:$0xff]
    %v1696 = vld [vmem:[%s1642 + $0x1a8] sm:$0xff]
    %v1697 = vld [vmem:[%s1642 + $0x1b0] sm:$0xff]
    %v1698 = vld [vmem:[%s1642 + $0x1b8] sm:$0xff]
    %v1699 = vld [vmem:[%s1642 + $0x1c0] sm:$0xff]
    %v1700 = vld [vmem:[%s1642 + $0x1c8] sm:$0xff]
    %v1701 = vld [vmem:[%s1642 + $0x1d0] sm:$0xff]
    %v1702 = vld [vmem:[%s1642 + $0x1d8] sm:$0xff]
    %v1703 = vld [vmem:[%s1642 + $0x1e0] sm:$0xff]
    %v1704 = vld [vmem:[%s1642 + $0x1e8] sm:$0xff]
    %v1705 = vld [vmem:[%s1642 + $0x1f0] sm:$0xff]
    %v1706 = vld [vmem:[%s1642 + $0x1f8] sm:$0xff]
    %1707 = vmatprep.subr.mxu0 %v1674
    %1708 = vmatpush1.msra.mxu0 %v1673
    %1709 = vmatprep.subr.mxu0 %v1672
    %1710 = vmatpush1.msra.mxu0 %v1671
    %1711 = vmatprep.subr.mxu0 %v1670
    %1712 = vmatpush1.msra.mxu0 %v1669
    %1713 = vmatprep.subr.mxu0 %v1668
    %1714 = vmatpush1.msra.mxu0 %v1667
    %1715 = vmatprep.subr.mxu0 %v1666
    %1716 = vmatpush1.msra.mxu0 %v1665
    %1717 = vmatprep.subr.mxu0 %v1664
    %1718 = vmatpush1.msra.mxu0 %v1663
    %1719 = vmatprep.subr.mxu0 %v1662
    %1720 = vmatpush1.msra.mxu0 %v1661
    %1721 = vmatprep.subr.mxu0 %v1660
    %1722 = vmatpush1.msra.mxu0 %v1659
    %1723 = vmatprep.subr.mxu0 %v1658
    %1724 = vmatpush1.msra.mxu0 %v1657
    %1725 = vmatprep.subr.mxu0 %v1656
    %1726 = vmatpush1.msra.mxu0 %v1655
    %1727 = vmatprep.subr.mxu0 %v1654
    %1728 = vmatpush1.msra.mxu0 %v1653
    %1729 = vmatprep.subr.mxu0 %v1652
    %1730 = vmatpush1.msra.mxu0 %v1651
    %1731 = vmatprep.subr.mxu0 %v1650
    %1732 = vmatpush1.msra.mxu0 %v1649
    %1733 = vmatprep.subr.mxu0 %v1648
    %1734 = vmatpush1.msra.mxu0 %v1647
    %1735 = vmatprep.subr.mxu0 %v1646
    %1736 = vmatpush1.msra.mxu0 %v1645
    %1737 = vmatprep.subr.mxu0 %v1644
    %1738 = vmatpush1.msra.mxu0 %v1643
    %1739 = vmatprep.subr.mxu0 %v1706
    %1740 = vmatpush2.msra.mxu0 %v1705
    %1741 = vmatprep.subr.mxu0 %v1704
    %1742 = vmatpush2.msra.mxu0 %v1703
    %1743 = vmatprep.subr.mxu0 %v1702
    %1744 = vmatpush2.msra.mxu0 %v1701
    %1745 = vmatprep.subr.mxu0 %v1700
    %1746 = vmatpush2.msra.mxu0 %v1699
    %1747 = vmatprep.subr.mxu0 %v1698
    %1748 = vmatpush2.msra.mxu0 %v1697
    %1749 = vmatprep.subr.mxu0 %v1696
    %1750 = vmatpush2.msra.mxu0 %v1695
    %1751 = vmatprep.subr.mxu0 %v1694
    %1752 = vmatpush2.msra.mxu0 %v1693
    %1753 = vmatprep.subr.mxu0 %v1692
    %1754 = vmatpush2.msra.mxu0 %v1691
    %1755 = vmatprep.subr.mxu0 %v1690
    %1756 = vmatpush2.msra.mxu0 %v1689
    %1757 = vmatprep.subr.mxu0 %v1688
    %1758 = vmatpush2.msra.mxu0 %v1687
    %1759 = vmatprep.subr.mxu0 %v1686
    %1760 = vmatpush2.msra.mxu0 %v1685
    %1761 = vmatprep.subr.mxu0 %v1684
    %1762 = vmatpush2.msra.mxu0 %v1683
    %1763 = vmatprep.subr.mxu0 %v1682
    %1764 = vmatpush2.msra.mxu0 %v1681
    %1765 = vmatprep.subr.mxu0 %v1680
    %1766 = vmatpush2.msra.mxu0 %v1679
    %1767 = vmatprep.subr.mxu0 %v1678
    %1768 = vmatpush2.msra.mxu0 %v1677
    %1769 = vmatprep.subr.mxu0 %v1676
    %1770 = vmatpush2.msra.mxu0 %v1675
    %1771 = vmatprep.mubr.f32.mxu0 %v1639
    %1772 = vmatmul.mubr.f32.gmra.mxu0 %v1638
    %v1773 = vpop.f32.mrf.mxu0
    %v1774 = vadd.f32 0.0, %v1773
    %v1775 = vpop.f32.mrf.mxu0
    %v1776 = vadd.f32 0.0, %v1775
    %1777 = vmatprep.mubr.f32.mxu0 %v1641
    %1778 = vmatmul.mubr.f32.gmra.mxu0 %v1640
    %v1779 = vpop.f32.mrf.mxu0
    %v1780 = vadd.f32 0.0, %v1779
    %v1781 = vpop.f32.mrf.mxu0
    %v1782 = vadd.f32 0.0, %v1781
    %1783 = vdwg.mxu0
    %v1784 = vmul.f32 %v1774, 0.5
    %v1785 = vmul.f32 %v1776, 0.5
    %v1786 = vmul.f32 %v1780, 0.5
    %v1787 = vmul.f32 %v1782, 0.5
    %v1788 = vtanh.pop %v1784
    %v1789 = vtanh.pop %v1785
    %v1790 = vtanh.pop %v1786
    %v1791 = vtanh.pop %v1787
    %v1792 = vadd.f32 %v1788, 1.0
    %v1793 = vadd.f32 %v1789, 1.0
    %v1794 = vadd.f32 %v1790, 1.0
    %v1795 = vadd.f32 %v1791, 1.0
    %v1796 = vmul.f32 %v1784, %v1792
    %v1797 = vmul.f32 %v1785, %v1793
    %v1798 = vmul.f32 %v1786, %v1794
    %v1799 = vmul.f32 %v1787, %v1795
    %s1800 = scalar_lea.vmem [#allocation7], 1536
    %v1801 = vld [vmem:[%s1800] sm:$0xff]
    %v1802 = vld [vmem:[%s1800 + $0x8] sm:$0xff]
    %v1803 = vld [vmem:[%s1800 + $0x10] sm:$0xff]
    %v1804 = vld [vmem:[%s1800 + $0x18] sm:$0xff]
    %v1805 = vld [vmem:[%s1800 + $0x20] sm:$0xff]
    %v1806 = vld [vmem:[%s1800 + $0x28] sm:$0xff]
    %v1807 = vld [vmem:[%s1800 + $0x30] sm:$0xff]
    %v1808 = vld [vmem:[%s1800 + $0x38] sm:$0xff]
    %v1809 = vld [vmem:[%s1800 + $0x40] sm:$0xff]
    %v1810 = vld [vmem:[%s1800 + $0x48] sm:$0xff]
    %v1811 = vld [vmem:[%s1800 + $0x50] sm:$0xff]
    %v1812 = vld [vmem:[%s1800 + $0x58] sm:$0xff]
    %v1813 = vld [vmem:[%s1800 + $0x60] sm:$0xff]
    %v1814 = vld [vmem:[%s1800 + $0x68] sm:$0xff]
    %v1815 = vld [vmem:[%s1800 + $0x70] sm:$0xff]
    %v1816 = vld [vmem:[%s1800 + $0x78] sm:$0xff]
    %v1817 = vld [vmem:[%s1800 + $0x80] sm:$0xff]
    %v1818 = vld [vmem:[%s1800 + $0x88] sm:$0xff]
    %v1819 = vld [vmem:[%s1800 + $0x90] sm:$0xff]
    %v1820 = vld [vmem:[%s1800 + $0x98] sm:$0xff]
    %v1821 = vld [vmem:[%s1800 + $0xa0] sm:$0xff]
    %v1822 = vld [vmem:[%s1800 + $0xa8] sm:$0xff]
    %v1823 = vld [vmem:[%s1800 + $0xb0] sm:$0xff]
    %v1824 = vld [vmem:[%s1800 + $0xb8] sm:$0xff]
    %v1825 = vld [vmem:[%s1800 + $0xc0] sm:$0xff]
    %v1826 = vld [vmem:[%s1800 + $0xc8] sm:$0xff]
    %v1827 = vld [vmem:[%s1800 + $0xd0] sm:$0xff]
    %v1828 = vld [vmem:[%s1800 + $0xd8] sm:$0xff]
    %v1829 = vld [vmem:[%s1800 + $0xe0] sm:$0xff]
    %v1830 = vld [vmem:[%s1800 + $0xe8] sm:$0xff]
    %v1831 = vld [vmem:[%s1800 + $0xf0] sm:$0xff]
    %v1832 = vld [vmem:[%s1800 + $0xf8] sm:$0xff]
    %v1833 = vld [vmem:[%s1800 + $0x100] sm:$0xff]
    %v1834 = vld [vmem:[%s1800 + $0x108] sm:$0xff]
    %v1835 = vld [vmem:[%s1800 + $0x110] sm:$0xff]
    %v1836 = vld [vmem:[%s1800 + $0x118] sm:$0xff]
    %v1837 = vld [vmem:[%s1800 + $0x120] sm:$0xff]
    %v1838 = vld [vmem:[%s1800 + $0x128] sm:$0xff]
    %v1839 = vld [vmem:[%s1800 + $0x130] sm:$0xff]
    %v1840 = vld [vmem:[%s1800 + $0x138] sm:$0xff]
    %v1841 = vld [vmem:[%s1800 + $0x140] sm:$0xff]
    %v1842 = vld [vmem:[%s1800 + $0x148] sm:$0xff]
    %v1843 = vld [vmem:[%s1800 + $0x150] sm:$0xff]
    %v1844 = vld [vmem:[%s1800 + $0x158] sm:$0xff]
    %v1845 = vld [vmem:[%s1800 + $0x160] sm:$0xff]
    %v1846 = vld [vmem:[%s1800 + $0x168] sm:$0xff]
    %v1847 = vld [vmem:[%s1800 + $0x170] sm:$0xff]
    %v1848 = vld [vmem:[%s1800 + $0x178] sm:$0xff]
    %v1849 = vld [vmem:[%s1800 + $0x180] sm:$0xff]
    %v1850 = vld [vmem:[%s1800 + $0x188] sm:$0xff]
    %v1851 = vld [vmem:[%s1800 + $0x190] sm:$0xff]
    %v1852 = vld [vmem:[%s1800 + $0x198] sm:$0xff]
    %v1853 = vld [vmem:[%s1800 + $0x1a0] sm:$0xff]
    %v1854 = vld [vmem:[%s1800 + $0x1a8] sm:$0xff]
    %v1855 = vld [vmem:[%s1800 + $0x1b0] sm:$0xff]
    %v1856 = vld [vmem:[%s1800 + $0x1b8] sm:$0xff]
    %v1857 = vld [vmem:[%s1800 + $0x1c0] sm:$0xff]
    %v1858 = vld [vmem:[%s1800 + $0x1c8] sm:$0xff]
    %v1859 = vld [vmem:[%s1800 + $0x1d0] sm:$0xff]
    %v1860 = vld [vmem:[%s1800 + $0x1d8] sm:$0xff]
    %v1861 = vld [vmem:[%s1800 + $0x1e0] sm:$0xff]
    %v1862 = vld [vmem:[%s1800 + $0x1e8] sm:$0xff]
    %v1863 = vld [vmem:[%s1800 + $0x1f0] sm:$0xff]
    %v1864 = vld [vmem:[%s1800 + $0x1f8] sm:$0xff]
    %1865 = vmatprep.subr.mxu0 %v1832
    %1866 = vmatpush1.msra.mxu0 %v1831
    %1867 = vmatprep.subr.mxu0 %v1830
    %1868 = vmatpush1.msra.mxu0 %v1829
    %1869 = vmatprep.subr.mxu0 %v1828
    %1870 = vmatpush1.msra.mxu0 %v1827
    %1871 = vmatprep.subr.mxu0 %v1826
    %1872 = vmatpush1.msra.mxu0 %v1825
    %1873 = vmatprep.subr.mxu0 %v1824
    %1874 = vmatpush1.msra.mxu0 %v1823
    %1875 = vmatprep.subr.mxu0 %v1822
    %1876 = vmatpush1.msra.mxu0 %v1821
    %1877 = vmatprep.subr.mxu0 %v1820
    %1878 = vmatpush1.msra.mxu0 %v1819
    %1879 = vmatprep.subr.mxu0 %v1818
    %1880 = vmatpush1.msra.mxu0 %v1817
    %1881 = vmatprep.subr.mxu0 %v1816
    %1882 = vmatpush1.msra.mxu0 %v1815
    %1883 = vmatprep.subr.mxu0 %v1814
    %1884 = vmatpush1.msra.mxu0 %v1813
    %1885 = vmatprep.subr.mxu0 %v1812
    %1886 = vmatpush1.msra.mxu0 %v1811
    %1887 = vmatprep.subr.mxu0 %v1810
    %1888 = vmatpush1.msra.mxu0 %v1809
    %1889 = vmatprep.subr.mxu0 %v1808
    %1890 = vmatpush1.msra.mxu0 %v1807
    %1891 = vmatprep.subr.mxu0 %v1806
    %1892 = vmatpush1.msra.mxu0 %v1805
    %1893 = vmatprep.subr.mxu0 %v1804
    %1894 = vmatpush1.msra.mxu0 %v1803
    %1895 = vmatprep.subr.mxu0 %v1802
    %1896 = vmatpush1.msra.mxu0 %v1801
    %1897 = vmatprep.subr.mxu0 %v1864
    %1898 = vmatpush2.msra.mxu0 %v1863
    %1899 = vmatprep.subr.mxu0 %v1862
    %1900 = vmatpush2.msra.mxu0 %v1861
    %1901 = vmatprep.subr.mxu0 %v1860
    %1902 = vmatpush2.msra.mxu0 %v1859
    %1903 = vmatprep.subr.mxu0 %v1858
    %1904 = vmatpush2.msra.mxu0 %v1857
    %1905 = vmatprep.subr.mxu0 %v1856
    %1906 = vmatpush2.msra.mxu0 %v1855
    %1907 = vmatprep.subr.mxu0 %v1854
    %1908 = vmatpush2.msra.mxu0 %v1853
    %1909 = vmatprep.subr.mxu0 %v1852
    %1910 = vmatpush2.msra.mxu0 %v1851
    %1911 = vmatprep.subr.mxu0 %v1850
    %1912 = vmatpush2.msra.mxu0 %v1849
    %1913 = vmatprep.subr.mxu0 %v1848
    %1914 = vmatpush2.msra.mxu0 %v1847
    %1915 = vmatprep.subr.mxu0 %v1846
    %1916 = vmatpush2.msra.mxu0 %v1845
    %1917 = vmatprep.subr.mxu0 %v1844
    %1918 = vmatpush2.msra.mxu0 %v1843
    %1919 = vmatprep.subr.mxu0 %v1842
    %1920 = vmatpush2.msra.mxu0 %v1841
    %1921 = vmatprep.subr.mxu0 %v1840
    %1922 = vmatpush2.msra.mxu0 %v1839
    %1923 = vmatprep.subr.mxu0 %v1838
    %1924 = vmatpush2.msra.mxu0 %v1837
    %1925 = vmatprep.subr.mxu0 %v1836
    %1926 = vmatpush2.msra.mxu0 %v1835
    %1927 = vmatprep.subr.mxu0 %v1834
    %1928 = vmatpush2.msra.mxu0 %v1833
    %1929 = vmatprep.mubr.f32.mxu0 %v1797
    %1930 = vmatmul.mubr.f32.gmra.mxu0 %v1796
    %v1931 = vpop.f32.mrf.mxu0
    %v1932 = vadd.f32 0.0, %v1931
    %v1933 = vpop.f32.mrf.mxu0
    %v1934 = vadd.f32 0.0, %v1933
    %1935 = vmatprep.mubr.f32.mxu0 %v1799
    %1936 = vmatmul.mubr.f32.gmra.mxu0 %v1798
    %v1937 = vpop.f32.mrf.mxu0
    %v1938 = vadd.f32 0.0, %v1937
    %v1939 = vpop.f32.mrf.mxu0
    %v1940 = vadd.f32 0.0, %v1939
    %1941 = vdwg.mxu0
    %v1942 = vmul.f32 %v1932, 0.5
    %v1943 = vmul.f32 %v1934, 0.5
    %v1944 = vmul.f32 %v1938, 0.5
    %v1945 = vmul.f32 %v1940, 0.5
    %v1946 = vtanh.pop %v1942
    %v1947 = vtanh.pop %v1943
    %v1948 = vtanh.pop %v1944
    %v1949 = vtanh.pop %v1945
    %v1950 = vadd.f32 %v1946, 1.0
    %v1951 = vadd.f32 %v1947, 1.0
    %v1952 = vadd.f32 %v1948, 1.0
    %v1953 = vadd.f32 %v1949, 1.0
    %v1954 = vmul.f32 %v1942, %v1950
    %v1955 = vmul.f32 %v1943, %v1951
    %v1956 = vmul.f32 %v1944, %v1952
    %v1957 = vmul.f32 %v1945, %v1953
    %s1958 = scalar_lea.vmem %s6, 3
    %v1959 = vld [vmem:[%s1958] ss:$4 sm:$0x3]
    %v1961 = vlaneseq
    %v1962 = vshrl.u32 %v1961, 7
    %v1963 = vsub.s32 0, %v1962
    %v1964 = vrot.slane %v1959, %v1963
    %v1965 = vlaneseq
    %v1966 = vshrl.u32 %v1965, 7
    %v1967 = vsub.s32 1, %v1966
    %v1968 = vrot.slane %v1959, %v1967
    %v1971 = vmul.f32 %v1954, %v1964
    %v1972 = vmul.f32 %v1955, %v1968
    %v1973 = vmul.f32 %v1956, %v1964
    %v1974 = vmul.f32 %v1957, %v1968
    %v1975 = vadd.f32 %v1971, %v1972
    %1976 = vadd.xlane.f32.xlu0 %v1975
    %v1977 = vpop.xlane.xlu0 %1976
    %v1978 = vadd.f32 %v1973, %v1974
    %1979 = vadd.xlane.f32.xlu0 %v1978
    %v1980 = vpop.xlane.xlu0 %1979
    %v1981 = vadd.f32 %v1612, %v1977
    %v1982 = vadd.f32 %v1613, %v1980
    %v1983 = vld [vmem:[%s2] sm:$0xff]
    %v1984 = vld [vmem:[%s2 + $0x8] sm:$0xff]
    %v1985 = vlaneseq
    %v1986 = vand.u32 %v1985, 127
    %1987 = vset.pattern.permute.xlu0 0
    %1988 = vperm.xlu0 %1987, %v1983
    %v1989 = vpop.permute.xlu0 %1988
    %1990 = vset.pattern.permute.xlu0 0
    %1991 = vperm.xlu0 %1990, %v1984
    %v1992 = vpop.permute.xlu0 %1991
    %vm1993 = vcmp.eq.s32.totalorder %v1986, %v1989
    %vm1994 = vcmp.eq.s32.totalorder %v1986, %v1992
    %v1995 = vsel %vm1993, %v1981, 0.0
    %v1996 = vsel %vm1994, %v1982, 0.0
    %v1997 = vadd.f32 %v1995, %v1996
    %1998 = vst [vmem:[#allocation8] sm:$0xff] %v1997
    // Predicated region
    $region42: #{tpu_custom_call.1} parent=1 // pred_check
      _
    $region43: #{tpu_custom_call.1} parent=1 // pred_check_branch
      %2000 = sbr.rel (0) target = $region45
    $region44: #{tpu_custom_call.1} parent=1 // pred_region
      %s2002 = ssub.s32 128, 128
      %2003 = vsyncadd [#allocation4], %s2002
      %s2005 = sshll.u32 [#allocation8], 4
      %s2006 = int_to_ptr.vmem [resolvable:$true] %s2005
      %2008 = dma.vmem_to_hbm [thread:$0]  %s2006, 128, %s7, [#allocation4]
    $region45: #{tpu_custom_call.1} parent=1 // pred_fallthru
      _
    // Predicated region
    $region46: #{tpu_custom_call.1} parent=1 // pred_check
      _
    $region47: #{tpu_custom_call.1} parent=1 // pred_check_branch
      %2010 = sbr.rel (0) target = $region49
    $region48: #{tpu_custom_call.1} parent=1 // pred_region
      %2011 = dma.done [#allocation4], 128
    $region49: #{tpu_custom_call.1} parent=1 // pred_fallthru
      _
    %2012 = vsyncpa [#allocation3], 1
    %2013 = vsyncpa [#allocation6], 1
    %2014 = vsyncpa [#allocation4], 1

</llo_original>
